<compile_context>
chip_gen: v7x
topology: tpu7x:2x2x1
jax: 0.10.0
libtpu: 0.0.40
codegen_flags: <defaults>
</compile_context>

<pallas_src>
import functools

import numpy as np
import jax
import jax.numpy as jnp
from jax.experimental import pallas as pl
from jax.experimental.pallas import tpu as pltpu

NEG_SLOPE = 0.01       # F.leaky_relu default negative_slope
C_OUT = 128            # conv output channels
N_POS = 12             # conv output positions: 3 * 4
K_TAPS = 16            # conv taps: 4 * 4 (single input channel)
H1 = 64                # fc1 hidden
N_ACT = 7              # fc2 outputs
IN_FLAT = 42           # 6 * 7 board
IN_PAD = 48            # 42 padded up to a multiple of 8 sublanes
BIAS_ROW = 47          # padding column carrying the constant 1.0 for the bias
FEAT = N_POS * C_OUT   # 1536 = fc1 input width
OUT_PAD = 128          # lane-dense fc2 output width (wrapper slices [:, :7])


def _round_up(x, m):
    return (x + m - 1) // m * m


def _default_act_bf16():
    """bf16 activation math only where the VPU has bf16 VALU (v6e / v7x)."""
    try:
        kind = jax.devices()[0].device_kind.lower()
        return ("v6" in kind) or ("v7" in kind)
    except Exception:
        return False


# --------------------------------------------------------------------------
# Kernel
# --------------------------------------------------------------------------
def _cnn_b_kernel(x_ref, weff_ref, w1_ref, b1_ref, w2_ref, b2_ref, out_ref,
                  *, act_bf16):
    """One batch tile, fully fused forward pass.

    x_ref:    (Bt, 48)      zero-padded flat board (col 47 == 1.0), bf16
    weff_ref: (48, 1536)    expanded conv weight + bias row, bf16
    w1_ref:   (1536, 64)    fc1 weight, permuted to position-major rows, bf16
    b1_ref:   (1, 64)       fc1 bias, f32
    w2_ref:   (64, 128)     fc2 weight (transposed, zero-padded lanes), bf16
    b2_ref:   (1, 128)      fc2 bias (zero-padded lanes), f32
    out_ref:  (Bt, 128)     action logits in lanes [:7], f32
    """
    # Fused im2col + conv + bias: one MXU matmul, f32 accumulation.
    conv = jnp.dot(x_ref[...], weff_ref[...],
                   preferred_element_type=jnp.float32)

    # leaky_relu as mul+max (2 VALU ops).  bf16 on v6e/v7x, f32 on v5e.
    if act_bf16:
        conv = conv.astype(jnp.bfloat16)
        conv = jnp.maximum(conv, conv * NEG_SLOPE)   # weak-typed -> stays bf16
    else:
        conv = jnp.maximum(conv, conv * NEG_SLOPE)
        conv = conv.astype(jnp.bfloat16)

    # fc1 + relu.
    h = jnp.dot(conv, w1_ref[...], preferred_element_type=jnp.float32)
    h = jnp.maximum(h + b1_ref[...], 0.0)

    # fc2 (lane-dense 128-wide output block).
    out = jnp.dot(h.astype(jnp.bfloat16), w2_ref[...],
                  preferred_element_type=jnp.float32)
    out_ref[...] = out + b2_ref[...]


# --------------------------------------------------------------------------
# One-time parameter re-layout (hoisted out of the per-call path)
# --------------------------------------------------------------------------
def _build_weff(conv_w, conv_b):
    """Expanded conv weight (48, 1536):
       Weff[i, p*128+c] = conv_w[c,0,kh,kw] with i=(oh+kh)*7+(ow+kw), p=oh*4+ow.
       Row 47 carries conv_b (paired with x[:,47] == 1.0); rows 42..46 stay 0."""
    wc = np.asarray(conv_w, np.float32).reshape(C_OUT, K_TAPS).T  # (16,128)
    weff = np.zeros((IN_PAD, N_POS, C_OUT), np.float32)
    for oh in range(3):
        for ow in range(4):
            p = oh * 4 + ow
            for kh in range(4):
                for kw in range(4):
                    weff[(oh + kh) * 7 + (ow + kw), p, :] = wc[kh * 4 + kw, :]
    weff[BIAS_ROW, :, :] = np.asarray(conv_b, np.float32)[None, :]
    return jnp.asarray(weff.reshape(IN_PAD, FEAT))


def prepare_params(params):
    """Run ONCE per parameter load; returns bf16/f32 kernel-ready weights."""
    conv_w, conv_b, fc1_w, fc1_b, fc2_w, fc2_b = params
    weff = _build_weff(conv_w, conv_b).astype(jnp.bfloat16)       # (48, 1536)
    # PyTorch flatten of (B,128,3,4) is channel-major (idx = c*12+p); our
    # conv_flat is position-major (j = p*128+c) -> permute fc1 weight rows.
    w1p = (jnp.asarray(fc1_w, jnp.float32).reshape(H1, C_OUT, N_POS)
           .transpose(2, 1, 0).reshape(FEAT, H1).astype(jnp.bfloat16))
    b1 = jnp.asarray(fc1_b, jnp.float32).reshape(1, H1)
    w2p = jnp.zeros((H1, OUT_PAD), jnp.bfloat16)
    w2p = w2p.at[:, :N_ACT].set(jnp.asarray(fc2_w, jnp.float32).T
                                .astype(jnp.bfloat16))            # (64, 128)
    b2p = jnp.zeros((1, OUT_PAD), jnp.float32)
    b2p = b2p.at[:, :N_ACT].set(jnp.asarray(fc2_b, jnp.float32))  # (1, 128)
    return weff, w1p, b1, w2p, b2p


# --------------------------------------------------------------------------
# Forward
# --------------------------------------------------------------------------
def _tile_batch(B, bt):
    """Balanced batch tiles (<8 rows pad per tile); >=2 steps when B > 8 so
    the 'parallel' grid axis spans both v7x TensorCores."""
    n_tiles = max(-(-B // bt), 1)
    if n_tiles == 1 and B > 8:
        n_tiles = 2
    Bt = _round_up(-(-B // n_tiles), 8)
    return Bt, n_tiles


@functools.partial(jax.jit, static_argnames=("bt", "act_bf16"))
def _forward_impl(state, prepped, *, bt, act_bf16):
    weff, w1p, b1, w2p, b2p = prepped
    B = state.shape[0]
    Bt, n_tiles = _tile_batch(B, bt)
    B_pad = Bt * n_tiles

    # Zero-padded bf16 input with the constant-1.0 bias column.
    x = jnp.zeros((B_pad, IN_PAD), jnp.bfloat16)
    x = x.at[:B, :IN_FLAT].set(state.astype(jnp.bfloat16))
    x = x.at[:, BIAS_ROW].set(jnp.asarray(1.0, jnp.bfloat16))

    kernel = functools.partial(_cnn_b_kernel, act_bf16=act_bf16)
    out = pl.pallas_call(
        kernel,
        out_shape=jax.ShapeDtypeStruct((B_pad, OUT_PAD), jnp.float32),
        grid=(n_tiles,),
        in_specs=[
            pl.BlockSpec((Bt, IN_PAD), lambda i: (i, 0)),        # batch-tiled x
            pl.BlockSpec((IN_PAD, FEAT), lambda i: (0, 0)),      # VMEM-resident
            pl.BlockSpec((FEAT, H1), lambda i: (0, 0)),
            pl.BlockSpec((1, H1), lambda i: (0, 0)),
            pl.BlockSpec((H1, OUT_PAD), lambda i: (0, 0)),
            pl.BlockSpec((1, OUT_PAD), lambda i: (0, 0)),
        ],
        out_specs=pl.BlockSpec((Bt, OUT_PAD), lambda i: (i, 0)),
        compiler_params=pltpu.CompilerParams(
            dimension_semantics=("parallel",),                   # 2 TCs on v7x
            vmem_limit_bytes=48 << 20),
    )(x, weff, w1p, b1, w2p, b2p)
    return out[:B, :N_ACT]


def cnn_b_forward(state, prepped, *, bt=1024, act_bf16=None):
    """state: (B, 42) float32; prepped = prepare_params(params).
    Returns (B, 7) action values (float32)."""
    if act_bf16 is None:
        act_bf16 = _default_act_bf16()
    return _forward_impl(state, prepped, bt=bt, act_bf16=bool(act_bf16))


# --------------------------------------------------------------------------
# Synthetic parameters + pure-JAX reference (verification)
# --------------------------------------------------------------------------
def init_params(key):
    ks = jax.random.split(key, 6)
    conv_w = jax.random.normal(ks[0], (C_OUT, 1, 4, 4), jnp.float32) * 0.10
    conv_b = jax.random.normal(ks[1], (C_OUT,), jnp.float32) * 0.10
    fc1_w = jax.random.normal(ks[2], (H1, C_OUT * N_POS), jnp.float32) * 0.02
    fc1_b = jax.random.normal(ks[3], (H1,), jnp.float32) * 0.02
    fc2_w = jax.random.normal(ks[4], (N_ACT, H1), jnp.float32) * 0.05
    fc2_b = jax.random.normal(ks[5], (N_ACT,), jnp.float32) * 0.05
    return conv_w, conv_b, fc1_w, fc1_b, fc2_w, fc2_b


def reference_forward(state, params):
    conv_w, conv_b, fc1_w, fc1_b, fc2_w, fc2_b = params
    B = state.shape[0]
    x = state.reshape(B, 1, 6, 7).astype(jnp.float32)
    y = jax.lax.conv_general_dilated(
        x, conv_w, window_strides=(1, 1), padding='VALID',
        dimension_numbers=('NCHW', 'OIHW', 'NCHW'))
    y = y + conv_b.reshape(1, C_OUT, 1, 1)
    y = jnp.where(y > 0, y, NEG_SLOPE * y)
    flat = y.reshape(B, -1)                                      # (B, 1536)
    h = jnp.maximum(flat @ fc1_w.T + fc1_b, 0.0)
    return h @ fc2_w.T + fc2_b


if __name__ == "__main__":
    key = jax.random.PRNGKey(0)
    k_params, k_state = jax.random.split(key)
    params = init_params(k_params)
    prepped = prepare_params(params)     # one-time weight re-layout / casts

    # Small batch (single 8-row tile).
    B = 2
    state = jax.random.normal(k_state, (B, 6 * 7), jnp.float32)  # (2, 42)
    out = jax.block_until_ready(cnn_b_forward(state, prepped))
    ref = reference_forward(state, params)
    assert out.shape == (B, N_ACT)
    # bf16 MXU operands / bf16 activation with f32 accumulation -> loose tol.
    assert jnp.allclose(out, ref, rtol=3e-2, atol=3e-2), (out, ref)

    # Exercise balanced multi-tile batching (B=50, bt=16 -> 4 tiles of 16).
    B2 = 50
    state2 = jax.random.normal(jax.random.PRNGKey(1), (B2, 6 * 7), jnp.float32)
    out2 = jax.block_until_ready(cnn_b_forward(state2, prepped, bt=16))
    ref2 = reference_forward(state2, params)
    assert out2.shape == (B2, N_ACT)
    assert jnp.allclose(out2, ref2, rtol=3e-2, atol=3e-2), (out2, ref2)

    # Exercise the forced >=2-step grid for megacore (B=20, bt=1024 -> 2x16).
    B3 = 20
    state3 = jax.random.normal(jax.random.PRNGKey(2), (B3, 6 * 7), jnp.float32)
    out3 = jax.block_until_ready(cnn_b_forward(state3, prepped))
    ref3 = reference_forward(state3, params)
    assert out3.shape == (B3, N_ACT)
    assert jnp.allclose(out3, ref3, rtol=3e-2, atol=3e-2), (out3, ref3)

    print("KERNEL_OK")
</pallas_src>

<mosaic_0001>
module attributes {stable_mosaic.version = 11 : i64} {
  func.func @_cnn_b_kernel(%arg0: i32, %arg1: memref<8x48xbf16, #tpu.memory_space<vmem>>, %arg2: memref<48x1536xbf16, #tpu.memory_space<vmem>>, %arg3: memref<1536x64xbf16, #tpu.memory_space<vmem>>, %arg4: memref<1x64xf32, #tpu.memory_space<vmem>>, %arg5: memref<64x128xbf16, #tpu.memory_space<vmem>>, %arg6: memref<1x128xf32, #tpu.memory_space<vmem>>, %arg7: memref<8x128xf32, #tpu.memory_space<vmem>>) attributes {dimension_semantics = [#tpu.dimension_semantics<parallel>], iteration_bounds = array<i64: 1>, scalar_prefetch = 0 : i64, scratch_operands = 0 : i64, tpu.core_type = #tpu.core_type<tc>, window_params = [{transform_indices = @transform_0, window_bounds = array<i64: 8, 48>}, {pipeline_mode = #tpu.pipeline_mode<synchronous>, transform_indices = @transform_1, window_bounds = array<i64: 48, 1536>}, {pipeline_mode = #tpu.pipeline_mode<synchronous>, transform_indices = @transform_2, window_bounds = array<i64: 1536, 64>}, {pipeline_mode = #tpu.pipeline_mode<synchronous>, transform_indices = @transform_3, window_bounds = array<i64: 1, 64>}, {pipeline_mode = #tpu.pipeline_mode<synchronous>, transform_indices = @transform_4, window_bounds = array<i64: 64, 128>}, {pipeline_mode = #tpu.pipeline_mode<synchronous>, transform_indices = @transform_5, window_bounds = array<i64: 1, 128>}, {transform_indices = @transform_6, window_bounds = array<i64: 8, 128>}]} {
    %c0 = arith.constant 0 : index
    %c0_0 = arith.constant 0 : index
    %0 = vector.load %arg1[%c0, %c0_0] : memref<8x48xbf16, #tpu.memory_space<vmem>>, vector<8x48xbf16>
    %c0_1 = arith.constant 0 : index
    %c0_2 = arith.constant 0 : index
    %1 = vector.load %arg2[%c0_1, %c0_2] : memref<48x1536xbf16, #tpu.memory_space<vmem>>, vector<48x1536xbf16>
    %cst = arith.constant dense<0.000000e+00> : vector<8x1536xf32>
    %2 = tpu.matmul %0, %1, %cst {dimension_numbers = #tpu.dot_dimension_numbers<[1], [0], [0], [1], [0, 0, 1, 1], [], []>} : vector<8x48xbf16>, vector<48x1536xbf16>, vector<8x1536xf32> -> vector<8x1536xf32>
    %cst_3 = arith.constant 0.00999999977 : f32
    %3 = vector.broadcast %cst_3 : f32 to vector<8x1536xf32>
    %4 = arith.mulf %2, %3 : vector<8x1536xf32>
    %5 = arith.maximumf %2, %4 : vector<8x1536xf32>
    %6 = arith.truncf %5 : vector<8x1536xf32> to vector<8x1536xbf16>
    %c0_4 = arith.constant 0 : index
    %c0_5 = arith.constant 0 : index
    %7 = vector.load %arg3[%c0_4, %c0_5] : memref<1536x64xbf16, #tpu.memory_space<vmem>>, vector<1536x64xbf16>
    %cst_6 = arith.constant dense<0.000000e+00> : vector<8x64xf32>
    %8 = tpu.matmul %6, %7, %cst_6 {dimension_numbers = #tpu.dot_dimension_numbers<[1], [0], [0], [1], [0, 0, 1, 1], [], []>} : vector<8x1536xbf16>, vector<1536x64xbf16>, vector<8x64xf32> -> vector<8x64xf32>
    %c0_7 = arith.constant 0 : index
    %c0_8 = arith.constant 0 : index
    %9 = vector.load %arg4[%c0_7, %c0_8] : memref<1x64xf32, #tpu.memory_space<vmem>>, vector<1x64xf32>
    %10 = vector.broadcast %9 : vector<1x64xf32> to vector<8x64xf32>
    %11 = arith.addf %8, %10 : vector<8x64xf32>
    %cst_9 = arith.constant 0.000000e+00 : f32
    %12 = vector.broadcast %cst_9 : f32 to vector<8x64xf32>
    %13 = arith.maximumf %11, %12 : vector<8x64xf32>
    %14 = arith.truncf %13 : vector<8x64xf32> to vector<8x64xbf16>
    %c0_10 = arith.constant 0 : index
    %c0_11 = arith.constant 0 : index
    %15 = vector.load %arg5[%c0_10, %c0_11] : memref<64x128xbf16, #tpu.memory_space<vmem>>, vector<64x128xbf16>
    %cst_12 = arith.constant dense<0.000000e+00> : vector<8x128xf32>
    %16 = tpu.matmul %14, %15, %cst_12 {dimension_numbers = #tpu.dot_dimension_numbers<[1], [0], [0], [1], [0, 0, 1, 1], [], []>} : vector<8x64xbf16>, vector<64x128xbf16>, vector<8x128xf32> -> vector<8x128xf32>
    %c0_13 = arith.constant 0 : index
    %c0_14 = arith.constant 0 : index
    %17 = vector.load %arg6[%c0_13, %c0_14] : memref<1x128xf32, #tpu.memory_space<vmem>>, vector<1x128xf32>
    %18 = vector.broadcast %17 : vector<1x128xf32> to vector<8x128xf32>
    %19 = arith.addf %16, %18 : vector<8x128xf32>
    %c0_15 = arith.constant 0 : index
    %c0_16 = arith.constant 0 : index
    %20 = vector.load %arg7[%c0_15, %c0_16] : memref<8x128xf32, #tpu.memory_space<vmem>>, vector<8x128xf32>
    tpu.vector_store %arg7[%c0_15, %c0_16], %19 {strides = array<i32>} : memref<8x128xf32, #tpu.memory_space<vmem>>, vector<8x128xf32>,
    return
  }
  func.func @transform_0(%arg0: i32) -> (i32, i32) {
    %c0_i32 = arith.constant 0 : i32
    %c0_i32_0 = arith.constant 0 : i32
    return %arg0, %c0_i32 : i32, i32
  }
  func.func @transform_1(%arg0: i32) -> (i32, i32) {
    %c0_i32 = arith.constant 0 : i32
    %c0_i32_0 = arith.constant 0 : i32
    %c0_i32_1 = arith.constant 0 : i32
    return %c0_i32, %c0_i32_0 : i32, i32
  }
  func.func @transform_2(%arg0: i32) -> (i32, i32) {
    %c0_i32 = arith.constant 0 : i32
    %c0_i32_0 = arith.constant 0 : i32
    %c0_i32_1 = arith.constant 0 : i32
    return %c0_i32, %c0_i32_0 : i32, i32
  }
  func.func @transform_3(%arg0: i32) -> (i32, i32) {
    %c0_i32 = arith.constant 0 : i32
    %c0_i32_0 = arith.constant 0 : i32
    %c0_i32_1 = arith.constant 0 : i32
    return %c0_i32, %c0_i32_0 : i32, i32
  }
  func.func @transform_4(%arg0: i32) -> (i32, i32) {
    %c0_i32 = arith.constant 0 : i32
    %c0_i32_0 = arith.constant 0 : i32
    %c0_i32_1 = arith.constant 0 : i32
    return %c0_i32, %c0_i32_0 : i32, i32
  }
  func.func @transform_5(%arg0: i32) -> (i32, i32) {
    %c0_i32 = arith.constant 0 : i32
    %c0_i32_0 = arith.constant 0 : i32
    %c0_i32_1 = arith.constant 0 : i32
    return %c0_i32, %c0_i32_0 : i32, i32
  }
  func.func @transform_6(%arg0: i32) -> (i32, i32) {
    %c0_i32 = arith.constant 0 : i32
    %c0_i32_0 = arith.constant 0 : i32
    return %arg0, %c0_i32 : i32, i32
  }
}

</mosaic_0001>

<llo_original>
// kernel: _forward_impl.1
$region0: #{_forward_impl.1}
  #allocation0 [shape = 'u32[]', space=smem, size = 0x4, offset = 0x4, fixed_abs, tag = 'smem constant byte address 0x4 - core index']
  #allocation1 [shape = 'u32[144,128]{1,0:T(1,128)}', space=vmem, size = 0x12000, scoped, tag = 'internal scratch']
  %s0 = inlined_call_operand.vmem [shape: bf16[8,48], index: 0, kind: input, shape index: {}]
  %s1 = inlined_call_operand.vmem [shape: bf16[48,1536], index: 1, kind: input, shape index: {}]
  %s2 = inlined_call_operand.vmem [shape: bf16[1536,64], index: 2, kind: input, shape index: {}]
  %s3 = inlined_call_operand.vmem [shape: f32[1,64], index: 3, kind: input, shape index: {}]
  %s4 = inlined_call_operand.vmem [shape: bf16[64,128], index: 4, kind: input, shape index: {}]
  %s5 = inlined_call_operand.vmem [shape: f32[1,128], index: 5, kind: input, shape index: {}]
  %s6 = inlined_call_operand.vmem [shape: f32[8,128], index: 6, kind: output, shape index: {}]
  %s7 = sld [smem:[#allocation0]]
  $region34: #{_forward_impl.1} parent=0
    _
  %s9 = ssub.s32 1, %s7
  %s10 = scalar_select 0, %s9, %s7
  // Predicated region
  $region2: #{_forward_impl.1} parent=0 // pred_check
    _
  $region3: #{_forward_impl.1} parent=0 // pred_check_branch
    %12 = sbr.rel (0) target = $region5
  $region4: #{_forward_impl.1} parent=0 // pred_region
    _
  $region5: #{_forward_impl.1} parent=0 // pred_fallthru
    _
  // Predicated region
  $region6: #{_forward_impl.1} parent=0 // pred_check
    _
  $region7: #{_forward_impl.1} parent=0 // pred_check_branch
    %14 = sbr.rel (0) target = $region9
  $region8: #{_forward_impl.1} parent=0 // pred_region
    _
  $region9: #{_forward_impl.1} parent=0 // pred_fallthru
    _
  // Predicated region
  $region10: #{_forward_impl.1} parent=0 // pred_check
    _
  $region11: #{_forward_impl.1} parent=0 // pred_check_branch
    %16 = sbr.rel (0) target = $region13
  $region12: #{_forward_impl.1} parent=0 // pred_region
    _
  $region13: #{_forward_impl.1} parent=0 // pred_fallthru
    _
  // Predicated region
  $region14: #{_forward_impl.1} parent=0 // pred_check
    _
  $region15: #{_forward_impl.1} parent=0 // pred_check_branch
    %18 = sbr.rel (0) target = $region17
  $region16: #{_forward_impl.1} parent=0 // pred_region
    _
  $region17: #{_forward_impl.1} parent=0 // pred_fallthru
    _
  // Predicated region
  $region18: #{_forward_impl.1} parent=0 // pred_check
    _
  $region19: #{_forward_impl.1} parent=0 // pred_check_branch
    %20 = sbr.rel (0) target = $region21
  $region20: #{_forward_impl.1} parent=0 // pred_region
    _
  $region21: #{_forward_impl.1} parent=0 // pred_fallthru
    _
  // Predicated region
  $region22: #{_forward_impl.1} parent=0 // pred_check
    _
  $region23: #{_forward_impl.1} parent=0 // pred_check_branch
    %22 = sbr.rel (0) target = $region25
  $region24: #{_forward_impl.1} parent=0 // pred_region
    _
  $region25: #{_forward_impl.1} parent=0 // pred_fallthru
    _
  %v24 = vld [vmem:[%s0] sm:$0xf]
  %v25 = vld [vmem:[%s1] sm:$0xff]
  %v26 = vld [vmem:[%s1 + $0x8] sm:$0xff]
  %v27 = vld [vmem:[%s1 + $0x10] sm:$0xff]
  %v28 = vld [vmem:[%s1 + $0x18] sm:$0xff]
  %v29 = vld [vmem:[%s1 + $0x20] sm:$0xff]
  %v30 = vld [vmem:[%s1 + $0x28] sm:$0xff]
  %v31 = vld [vmem:[%s1 + $0x30] sm:$0xff]
  %v32 = vld [vmem:[%s1 + $0x38] sm:$0xff]
  %v33 = vld [vmem:[%s1 + $0x40] sm:$0xff]
  %v34 = vld [vmem:[%s1 + $0x48] sm:$0xff]
  %v35 = vld [vmem:[%s1 + $0x50] sm:$0xff]
  %v36 = vld [vmem:[%s1 + $0x58] sm:$0xff]
  %v37 = vld [vmem:[%s1 + $0x60] sm:$0xff]
  %v38 = vld [vmem:[%s1 + $0x68] sm:$0xff]
  %v39 = vld [vmem:[%s1 + $0x70] sm:$0xff]
  %v40 = vld [vmem:[%s1 + $0x78] sm:$0xff]
  %v41 = vld [vmem:[%s1 + $0x80] sm:$0xff]
  %v42 = vld [vmem:[%s1 + $0x88] sm:$0xff]
  %v43 = vld [vmem:[%s1 + $0x90] sm:$0xff]
  %v44 = vld [vmem:[%s1 + $0x98] sm:$0xff]
  %v45 = vld [vmem:[%s1 + $0xa0] sm:$0xff]
  %v46 = vld [vmem:[%s1 + $0xa8] sm:$0xff]
  %v47 = vld [vmem:[%s1 + $0xb0] sm:$0xff]
  %v48 = vld [vmem:[%s1 + $0xb8] sm:$0xff]
  %v49 = vld [vmem:[%s1 + $0xc0] sm:$0xff]
  %v50 = vld [vmem:[%s1 + $0xc8] sm:$0xff]
  %v51 = vld [vmem:[%s1 + $0xd0] sm:$0xff]
  %v52 = vld [vmem:[%s1 + $0xd8] sm:$0xff]
  %v53 = vld [vmem:[%s1 + $0xe0] sm:$0xff]
  %v54 = vld [vmem:[%s1 + $0xe8] sm:$0xff]
  %v55 = vld [vmem:[%s1 + $0xf0] sm:$0xff]
  %v56 = vld [vmem:[%s1 + $0xf8] sm:$0xff]
  %v57 = vld [vmem:[%s1 + $0x100] sm:$0xff]
  %v58 = vld [vmem:[%s1 + $0x108] sm:$0xff]
  %v59 = vld [vmem:[%s1 + $0x110] sm:$0xff]
  %v60 = vld [vmem:[%s1 + $0x118] sm:$0xff]
  %v97 = vunpack.c.l.b16 %v25
  %v98 = vunpack.c.h.b16 %v25
  %v99 = vunpack.c.l.b16 %v26
  %v100 = vunpack.c.h.b16 %v26
  %v101 = vunpack.c.l.b16 %v27
  %v102 = vunpack.c.h.b16 %v27
  %v103 = vunpack.c.l.b16 %v28
  %v104 = vunpack.c.h.b16 %v28
  %v105 = vunpack.c.l.b16 %v29
  %v106 = vunpack.c.h.b16 %v29
  %v107 = vunpack.c.l.b16 %v30
  %v108 = vunpack.c.h.b16 %v30
  %v109 = vunpack.c.l.b16 %v31
  %v110 = vunpack.c.h.b16 %v31
  %v111 = vunpack.c.l.b16 %v32
  %v112 = vunpack.c.h.b16 %v32
  %v113 = vunpack.c.l.b16 %v33
  %v114 = vunpack.c.h.b16 %v33
  %v115 = vunpack.c.l.b16 %v34
  %v116 = vunpack.c.h.b16 %v34
  %v117 = vunpack.c.l.b16 %v35
  %v118 = vunpack.c.h.b16 %v35
  %v119 = vunpack.c.l.b16 %v36
  %v120 = vunpack.c.h.b16 %v36
  %v121 = vunpack.c.l.b16 %v37
  %v122 = vunpack.c.h.b16 %v37
  %v123 = vunpack.c.l.b16 %v38
  %v124 = vunpack.c.h.b16 %v38
  %v125 = vunpack.c.l.b16 %v39
  %v126 = vunpack.c.h.b16 %v39
  %v127 = vunpack.c.l.b16 %v40
  %v128 = vunpack.c.h.b16 %v40
  %v129 = vunpack.c.l.b16 %v41
  %v130 = vunpack.c.h.b16 %v41
  %v131 = vunpack.c.l.b16 %v42
  %v132 = vunpack.c.h.b16 %v42
  %v133 = vunpack.c.l.b16 %v43
  %v134 = vunpack.c.h.b16 %v43
  %v135 = vunpack.c.l.b16 %v44
  %v136 = vunpack.c.h.b16 %v44
  %v137 = vunpack.c.l.b16 %v45
  %v138 = vunpack.c.h.b16 %v45
  %v139 = vunpack.c.l.b16 %v46
  %v140 = vunpack.c.h.b16 %v46
  %v141 = vunpack.c.l.b16 %v47
  %v142 = vunpack.c.h.b16 %v47
  %v143 = vunpack.c.l.b16 %v48
  %v144 = vunpack.c.h.b16 %v48
  %v145 = vunpack.c.l.b16 %v49
  %v146 = vunpack.c.h.b16 %v49
  %v147 = vunpack.c.l.b16 %v50
  %v148 = vunpack.c.h.b16 %v50
  %v149 = vunpack.c.l.b16 %v51
  %v150 = vunpack.c.h.b16 %v51
  %v151 = vunpack.c.l.b16 %v52
  %v152 = vunpack.c.h.b16 %v52
  %v153 = vunpack.c.l.b16 %v53
  %v154 = vunpack.c.h.b16 %v53
  %v155 = vunpack.c.l.b16 %v54
  %v156 = vunpack.c.h.b16 %v54
  %v157 = vunpack.c.l.b16 %v55
  %v158 = vunpack.c.h.b16 %v55
  %v159 = vunpack.c.l.b16 %v56
  %v160 = vunpack.c.h.b16 %v56
  %v161 = vunpack.c.l.b16 %v57
  %v162 = vunpack.c.h.b16 %v57
  %v163 = vunpack.c.l.b16 %v58
  %v164 = vunpack.c.h.b16 %v58
  %v165 = vunpack.c.l.b16 %v59
  %v166 = vunpack.c.h.b16 %v59
  %v167 = vunpack.c.l.b16 %v60
  %v168 = vunpack.c.h.b16 %v60
  %v169 = vpack.c.b16 %v109, %v97
  %v170 = vpack.c.b16 %v110, %v98
  %v171 = vpack.c.b16 %v111, %v99
  %v172 = vpack.c.b16 %v112, %v100
  %v173 = vpack.c.b16 %v113, %v101
  %v174 = vpack.c.b16 %v114, %v102
  %v175 = vpack.c.b16 %v115, %v103
  %v176 = vpack.c.b16 %v116, %v104
  %v177 = vpack.c.b16 %v117, %v105
  %v178 = vpack.c.b16 %v118, %v106
  %v179 = vpack.c.b16 %v119, %v107
  %v180 = vpack.c.b16 %v120, %v108
  %v181 = vpack.c.b16 %v133, %v121
  %v182 = vpack.c.b16 %v134, %v122
  %v183 = vpack.c.b16 %v135, %v123
  %v184 = vpack.c.b16 %v136, %v124
  %v185 = vpack.c.b16 %v137, %v125
  %v186 = vpack.c.b16 %v138, %v126
  %v187 = vpack.c.b16 %v139, %v127
  %v188 = vpack.c.b16 %v140, %v128
  %v189 = vpack.c.b16 %v141, %v129
  %v190 = vpack.c.b16 %v142, %v130
  %v191 = vpack.c.b16 %v143, %v131
  %v192 = vpack.c.b16 %v144, %v132
  %v193 = vpack.c.b16 %v157, %v145
  %v194 = vpack.c.b16 %v158, %v146
  %v195 = vpack.c.b16 %v159, %v147
  %v196 = vpack.c.b16 %v160, %v148
  %v197 = vpack.c.b16 %v161, %v149
  %v198 = vpack.c.b16 %v162, %v150
  %v199 = vpack.c.b16 %v163, %v151
  %v200 = vpack.c.b16 %v164, %v152
  %v201 = vpack.c.b16 %v165, %v153
  %v202 = vpack.c.b16 %v166, %v154
  %v203 = vpack.c.b16 %v167, %v155
  %v204 = vpack.c.b16 %v168, %v156
  %vm241 = vcmask 392192
  %v243 = vsel %vm241, %v24, 0
  %245 = vmatprep.subr.bf16.mxu0 %v170
  %246 = vmatpush1.bf16.msra.mxu0 %v169
  %247 = vmatprep.subr.bf16.mxu0 %v182
  %248 = vmatpush1.bf16.msra.mxu0 %v181
  %249 = vmatprep.subr.bf16.mxu0 %v194
  %250 = vmatpush1.bf16.msra.mxu0 %v193
  %251 = vmatprep.subr.bf16.mxu0 0
  %252 = vmatpush1.bf16.msra.mxu0 0
  %253 = vmatprep.subr.bf16.mxu0 0
  %254 = vmatpush1.bf16.msra.mxu0 0
  %255 = vmatprep.subr.bf16.mxu0 0
  %256 = vmatpush1.bf16.msra.mxu0 0
  %257 = vmatprep.subr.bf16.mxu0 0
  %258 = vmatpush1.bf16.msra.mxu0 0
  %259 = vmatprep.subr.bf16.mxu0 0
  %260 = vmatpush1.bf16.msra.mxu0 0
  %261 = vmatprep.subr.bf16.mxu0 0
  %262 = vmatpush1.bf16.msra.mxu0 0
  %263 = vmatprep.subr.bf16.mxu0 0
  %264 = vmatpush1.bf16.msra.mxu0 0
  %265 = vmatprep.subr.bf16.mxu0 0
  %266 = vmatpush1.bf16.msra.mxu0 0
  %267 = vmatprep.subr.bf16.mxu0 0
  %268 = vmatpush1.bf16.msra.mxu0 0
  %269 = vmatprep.subr.bf16.mxu0 0
  %270 = vmatpush1.bf16.msra.mxu0 0
  %271 = vmatprep.subr.bf16.mxu0 0
  %272 = vmatpush1.bf16.msra.mxu0 0
  %273 = vmatprep.subr.bf16.mxu0 0
  %274 = vmatpush1.bf16.msra.mxu0 0
  %275 = vmatprep.subr.bf16.mxu0 0
  %276 = vmatpush1.bf16.msra.mxu0 0
  %277 = vmatprep.mubr.bf16.mxu0 0
  %278 = vmatmul.mubr.bf16.gmra.mrb[0].mxu0 %v243
  %v279 = vpop.f32.mrb[0].mxu0
  %v280 = vadd.f32 0.0, %v279
  %v281 = vpop.f32.mrb[0].mxu0
  %v282 = vadd.f32 0.0, %v281
  %v283 = vpop.f32.mrb[0].mxu0
  %v284 = vpop.f32.mrb[0].mxu0
  %285 = vdwg.mxu0
  %286 = vmatprep.subr.bf16.mxu0 %v172
  %287 = vmatpush1.bf16.msra.mxu0 %v171
  %288 = vmatprep.subr.bf16.mxu0 %v184
  %289 = vmatpush1.bf16.msra.mxu0 %v183
  %290 = vmatprep.subr.bf16.mxu0 %v196
  %291 = vmatpush1.bf16.msra.mxu0 %v195
  %292 = vmatprep.subr.bf16.mxu0 0
  %293 = vmatpush1.bf16.msra.mxu0 0
  %294 = vmatprep.subr.bf16.mxu0 0
  %295 = vmatpush1.bf16.msra.mxu0 0
  %296 = vmatprep.subr.bf16.mxu0 0
  %297 = vmatpush1.bf16.msra.mxu0 0
  %298 = vmatprep.subr.bf16.mxu0 0
  %299 = vmatpush1.bf16.msra.mxu0 0
  %300 = vmatprep.subr.bf16.mxu0 0
  %301 = vmatpush1.bf16.msra.mxu0 0
  %302 = vmatprep.subr.bf16.mxu0 0
  %303 = vmatpush1.bf16.msra.mxu0 0
  %304 = vmatprep.subr.bf16.mxu0 0
  %305 = vmatpush1.bf16.msra.mxu0 0
  %306 = vmatprep.subr.bf16.mxu0 0
  %307 = vmatpush1.bf16.msra.mxu0 0
  %308 = vmatprep.subr.bf16.mxu0 0
  %309 = vmatpush1.bf16.msra.mxu0 0
  %310 = vmatprep.subr.bf16.mxu0 0
  %311 = vmatpush1.bf16.msra.mxu0 0
  %312 = vmatprep.subr.bf16.mxu0 0
  %313 = vmatpush1.bf16.msra.mxu0 0
  %314 = vmatprep.subr.bf16.mxu0 0
  %315 = vmatpush1.bf16.msra.mxu0 0
  %316 = vmatprep.subr.bf16.mxu0 0
  %317 = vmatpush1.bf16.msra.mxu0 0
  %318 = vmatprep.mubr.bf16.mxu0 0
  %319 = vmatmul.mubr.bf16.gmra.mrb[0].mxu0 %v243
  %v320 = vpop.f32.mrb[0].mxu0
  %v321 = vadd.f32 0.0, %v320
  %v322 = vpop.f32.mrb[0].mxu0
  %v323 = vadd.f32 0.0, %v322
  %v324 = vpop.f32.mrb[0].mxu0
  %v325 = vpop.f32.mrb[0].mxu0
  %326 = vdwg.mxu0
  %327 = vmatprep.subr.bf16.mxu0 %v174
  %328 = vmatpush1.bf16.msra.mxu0 %v173
  %329 = vmatprep.subr.bf16.mxu0 %v186
  %330 = vmatpush1.bf16.msra.mxu0 %v185
  %331 = vmatprep.subr.bf16.mxu0 %v198
  %332 = vmatpush1.bf16.msra.mxu0 %v197
  %333 = vmatprep.subr.bf16.mxu0 0
  %334 = vmatpush1.bf16.msra.mxu0 0
  %335 = vmatprep.subr.bf16.mxu0 0
  %336 = vmatpush1.bf16.msra.mxu0 0
  %337 = vmatprep.subr.bf16.mxu0 0
  %338 = vmatpush1.bf16.msra.mxu0 0
  %339 = vmatprep.subr.bf16.mxu0 0
  %340 = vmatpush1.bf16.msra.mxu0 0
  %341 = vmatprep.subr.bf16.mxu0 0
  %342 = vmatpush1.bf16.msra.mxu0 0
  %343 = vmatprep.subr.bf16.mxu0 0
  %344 = vmatpush1.bf16.msra.mxu0 0
  %345 = vmatprep.subr.bf16.mxu0 0
  %346 = vmatpush1.bf16.msra.mxu0 0
  %347 = vmatprep.subr.bf16.mxu0 0
  %348 = vmatpush1.bf16.msra.mxu0 0
  %349 = vmatprep.subr.bf16.mxu0 0
  %350 = vmatpush1.bf16.msra.mxu0 0
  %351 = vmatprep.subr.bf16.mxu0 0
  %352 = vmatpush1.bf16.msra.mxu0 0
  %353 = vmatprep.subr.bf16.mxu0 0
  %354 = vmatpush1.bf16.msra.mxu0 0
  %355 = vmatprep.subr.bf16.mxu0 0
  %356 = vmatpush1.bf16.msra.mxu0 0
  %357 = vmatprep.subr.bf16.mxu0 0
  %358 = vmatpush1.bf16.msra.mxu0 0
  %359 = vmatprep.mubr.bf16.mxu0 0
  %360 = vmatmul.mubr.bf16.gmra.mrb[0].mxu0 %v243
  %v361 = vpop.f32.mrb[0].mxu0
  %v362 = vadd.f32 0.0, %v361
  %v363 = vpop.f32.mrb[0].mxu0
  %v364 = vadd.f32 0.0, %v363
  %v365 = vpop.f32.mrb[0].mxu0
  %v366 = vpop.f32.mrb[0].mxu0
  %367 = vdwg.mxu0
  %368 = vmatprep.subr.bf16.mxu0 %v176
  %369 = vmatpush1.bf16.msra.mxu0 %v175
  %370 = vmatprep.subr.bf16.mxu0 %v188
  %371 = vmatpush1.bf16.msra.mxu0 %v187
  %372 = vmatprep.subr.bf16.mxu0 %v200
  %373 = vmatpush1.bf16.msra.mxu0 %v199
  %374 = vmatprep.subr.bf16.mxu0 0
  %375 = vmatpush1.bf16.msra.mxu0 0
  %376 = vmatprep.subr.bf16.mxu0 0
  %377 = vmatpush1.bf16.msra.mxu0 0
  %378 = vmatprep.subr.bf16.mxu0 0
  %379 = vmatpush1.bf16.msra.mxu0 0
  %380 = vmatprep.subr.bf16.mxu0 0
  %381 = vmatpush1.bf16.msra.mxu0 0
  %382 = vmatprep.subr.bf16.mxu0 0
  %383 = vmatpush1.bf16.msra.mxu0 0
  %384 = vmatprep.subr.bf16.mxu0 0
  %385 = vmatpush1.bf16.msra.mxu0 0
  %386 = vmatprep.subr.bf16.mxu0 0
  %387 = vmatpush1.bf16.msra.mxu0 0
  %388 = vmatprep.subr.bf16.mxu0 0
  %389 = vmatpush1.bf16.msra.mxu0 0
  %390 = vmatprep.subr.bf16.mxu0 0
  %391 = vmatpush1.bf16.msra.mxu0 0
  %392 = vmatprep.subr.bf16.mxu0 0
  %393 = vmatpush1.bf16.msra.mxu0 0
  %394 = vmatprep.subr.bf16.mxu0 0
  %395 = vmatpush1.bf16.msra.mxu0 0
  %396 = vmatprep.subr.bf16.mxu0 0
  %397 = vmatpush1.bf16.msra.mxu0 0
  %398 = vmatprep.subr.bf16.mxu0 0
  %399 = vmatpush1.bf16.msra.mxu0 0
  %400 = vmatprep.mubr.bf16.mxu0 0
  %401 = vmatmul.mubr.bf16.gmra.mrb[0].mxu0 %v243
  %v402 = vpop.f32.mrb[0].mxu0
  %v403 = vadd.f32 0.0, %v402
  %v404 = vpop.f32.mrb[0].mxu0
  %v405 = vadd.f32 0.0, %v404
  %v406 = vpop.f32.mrb[0].mxu0
  %v407 = vpop.f32.mrb[0].mxu0
  %408 = vdwg.mxu0
  %409 = vmatprep.subr.bf16.mxu0 %v178
  %410 = vmatpush1.bf16.msra.mxu0 %v177
  %411 = vmatprep.subr.bf16.mxu0 %v190
  %412 = vmatpush1.bf16.msra.mxu0 %v189
  %413 = vmatprep.subr.bf16.mxu0 %v202
  %414 = vmatpush1.bf16.msra.mxu0 %v201
  %415 = vmatprep.subr.bf16.mxu0 0
  %416 = vmatpush1.bf16.msra.mxu0 0
  %417 = vmatprep.subr.bf16.mxu0 0
  %418 = vmatpush1.bf16.msra.mxu0 0
  %419 = vmatprep.subr.bf16.mxu0 0
  %420 = vmatpush1.bf16.msra.mxu0 0
  %421 = vmatprep.subr.bf16.mxu0 0
  %422 = vmatpush1.bf16.msra.mxu0 0
  %423 = vmatprep.subr.bf16.mxu0 0
  %424 = vmatpush1.bf16.msra.mxu0 0
  %425 = vmatprep.subr.bf16.mxu0 0
  %426 = vmatpush1.bf16.msra.mxu0 0
  %427 = vmatprep.subr.bf16.mxu0 0
  %428 = vmatpush1.bf16.msra.mxu0 0
  %429 = vmatprep.subr.bf16.mxu0 0
  %430 = vmatpush1.bf16.msra.mxu0 0
  %431 = vmatprep.subr.bf16.mxu0 0
  %432 = vmatpush1.bf16.msra.mxu0 0
  %433 = vmatprep.subr.bf16.mxu0 0
  %434 = vmatpush1.bf16.msra.mxu0 0
  %435 = vmatprep.subr.bf16.mxu0 0
  %436 = vmatpush1.bf16.msra.mxu0 0
  %437 = vmatprep.subr.bf16.mxu0 0
  %438 = vmatpush1.bf16.msra.mxu0 0
  %439 = vmatprep.subr.bf16.mxu0 0
  %440 = vmatpush1.bf16.msra.mxu0 0
  %441 = vmatprep.mubr.bf16.mxu0 0
  %442 = vmatmul.mubr.bf16.gmra.mrb[0].mxu0 %v243
  %v443 = vpop.f32.mrb[0].mxu0
  %v444 = vadd.f32 0.0, %v443
  %v445 = vpop.f32.mrb[0].mxu0
  %v446 = vadd.f32 0.0, %v445
  %v447 = vpop.f32.mrb[0].mxu0
  %v448 = vpop.f32.mrb[0].mxu0
  %449 = vdwg.mxu0
  %450 = vmatprep.subr.bf16.mxu0 %v180
  %451 = vmatpush1.bf16.msra.mxu0 %v179
  %452 = vmatprep.subr.bf16.mxu0 %v192
  %453 = vmatpush1.bf16.msra.mxu0 %v191
  %454 = vmatprep.subr.bf16.mxu0 %v204
  %455 = vmatpush1.bf16.msra.mxu0 %v203
  %456 = vmatprep.subr.bf16.mxu0 0
  %457 = vmatpush1.bf16.msra.mxu0 0
  %458 = vmatprep.subr.bf16.mxu0 0
  %459 = vmatpush1.bf16.msra.mxu0 0
  %460 = vmatprep.subr.bf16.mxu0 0
  %461 = vmatpush1.bf16.msra.mxu0 0
  %462 = vmatprep.subr.bf16.mxu0 0
  %463 = vmatpush1.bf16.msra.mxu0 0
  %464 = vmatprep.subr.bf16.mxu0 0
  %465 = vmatpush1.bf16.msra.mxu0 0
  %466 = vmatprep.subr.bf16.mxu0 0
  %467 = vmatpush1.bf16.msra.mxu0 0
  %468 = vmatprep.subr.bf16.mxu0 0
  %469 = vmatpush1.bf16.msra.mxu0 0
  %470 = vmatprep.subr.bf16.mxu0 0
  %471 = vmatpush1.bf16.msra.mxu0 0
  %472 = vmatprep.subr.bf16.mxu0 0
  %473 = vmatpush1.bf16.msra.mxu0 0
  %474 = vmatprep.subr.bf16.mxu0 0
  %475 = vmatpush1.bf16.msra.mxu0 0
  %476 = vmatprep.subr.bf16.mxu0 0
  %477 = vmatpush1.bf16.msra.mxu0 0
  %478 = vmatprep.subr.bf16.mxu0 0
  %479 = vmatpush1.bf16.msra.mxu0 0
  %480 = vmatprep.subr.bf16.mxu0 0
  %481 = vmatpush1.bf16.msra.mxu0 0
  %482 = vmatprep.mubr.bf16.mxu0 0
  %483 = vmatmul.mubr.bf16.gmra.mrb[0].mxu0 %v243
  %v484 = vpop.f32.mrb[0].mxu0
  %v485 = vadd.f32 0.0, %v484
  %v486 = vpop.f32.mrb[0].mxu0
  %v487 = vadd.f32 0.0, %v486
  %v488 = vpop.f32.mrb[0].mxu0
  %v489 = vpop.f32.mrb[0].mxu0
  %490 = vdwg.mxu0
  %v491 = vmul.f32 %v280, 0.01
  %v492 = vmul.f32 %v282, 0.01
  %v493 = vmul.f32 %v321, 0.01
  %v494 = vmul.f32 %v323, 0.01
  %v495 = vmul.f32 %v362, 0.01
  %v496 = vmul.f32 %v364, 0.01
  %v497 = vmul.f32 %v403, 0.01
  %v498 = vmul.f32 %v405, 0.01
  %v499 = vmul.f32 %v444, 0.01
  %v500 = vmul.f32 %v446, 0.01
  %v501 = vmul.f32 %v485, 0.01
  %v502 = vmul.f32 %v487, 0.01
  %v503 = vmax.f32 %v280, %v491
  %v504 = vmax.f32 %v282, %v492
  %v505 = vmax.f32 %v321, %v493
  %v506 = vmax.f32 %v323, %v494
  %v507 = vmax.f32 %v362, %v495
  %v508 = vmax.f32 %v364, %v496
  %v509 = vmax.f32 %v403, %v497
  %v510 = vmax.f32 %v405, %v498
  %v511 = vmax.f32 %v444, %v499
  %v512 = vmax.f32 %v446, %v500
  %v513 = vmax.f32 %v485, %v501
  %v514 = vmax.f32 %v487, %v502
  %v515 = vpack.c.bf16 %v503, %v503
  %v516 = vpack.c.bf16 %v504, %v504
  %v517 = vpack.c.bf16 %v505, %v505
  %v518 = vpack.c.bf16 %v506, %v506
  %v519 = vpack.c.bf16 %v507, %v507
  %v520 = vpack.c.bf16 %v508, %v508
  %v521 = vpack.c.bf16 %v509, %v509
  %v522 = vpack.c.bf16 %v510, %v510
  %v523 = vpack.c.bf16 %v511, %v511
  %v524 = vpack.c.bf16 %v512, %v512
  %v525 = vpack.c.bf16 %v513, %v513
  %v526 = vpack.c.bf16 %v514, %v514
  %v527 = vld [vmem:[%s2] sm:$0xf]
  %v528 = vld [vmem:[%s2 + $0x4] sm:$0xf]
  %v529 = vld [vmem:[%s2 + $0x8] sm:$0xf]
  %v530 = vld [vmem:[%s2 + $0xc] sm:$0xf]
  %v531 = vld [vmem:[%s2 + $0x10] sm:$0xf]
  %v532 = vld [vmem:[%s2 + $0x14] sm:$0xf]
  %v533 = vld [vmem:[%s2 + $0x18] sm:$0xf]
  %v534 = vld [vmem:[%s2 + $0x1c] sm:$0xf]
  %v535 = vld [vmem:[%s2 + $0x20] sm:$0xf]
  %v536 = vld [vmem:[%s2 + $0x24] sm:$0xf]
  %v537 = vld [vmem:[%s2 + $0x28] sm:$0xf]
  %v538 = vld [vmem:[%s2 + $0x2c] sm:$0xf]
  %v539 = vld [vmem:[%s2 + $0x30] sm:$0xf]
  %v540 = vld [vmem:[%s2 + $0x34] sm:$0xf]
  %v541 = vld [vmem:[%s2 + $0x38] sm:$0xf]
  %v542 = vld [vmem:[%s2 + $0x3c] sm:$0xf]
  %v543 = vld [vmem:[%s2 + $0x40] sm:$0xf]
  %v544 = vld [vmem:[%s2 + $0x44] sm:$0xf]
  %v545 = vld [vmem:[%s2 + $0x48] sm:$0xf]
  %v546 = vld [vmem:[%s2 + $0x4c] sm:$0xf]
  %v547 = vld [vmem:[%s2 + $0x50] sm:$0xf]
  %v548 = vld [vmem:[%s2 + $0x54] sm:$0xf]
  %v549 = vld [vmem:[%s2 + $0x58] sm:$0xf]
  %v550 = vld [vmem:[%s2 + $0x5c] sm:$0xf]
  %v551 = vld [vmem:[%s2 + $0x60] sm:$0xf]
  %v552 = vld [vmem:[%s2 + $0x64] sm:$0xf]
  %v553 = vld [vmem:[%s2 + $0x68] sm:$0xf]
  %v554 = vld [vmem:[%s2 + $0x6c] sm:$0xf]
  %v555 = vld [vmem:[%s2 + $0x70] sm:$0xf]
  %v556 = vld [vmem:[%s2 + $0x74] sm:$0xf]
  %v557 = vld [vmem:[%s2 + $0x78] sm:$0xf]
  %v558 = vld [vmem:[%s2 + $0x7c] sm:$0xf]
  %v559 = vld [vmem:[%s2 + $0x80] sm:$0xf]
  %v560 = vld [vmem:[%s2 + $0x84] sm:$0xf]
  %v561 = vld [vmem:[%s2 + $0x88] sm:$0xf]
  %v562 = vld [vmem:[%s2 + $0x8c] sm:$0xf]
  %v563 = vld [vmem:[%s2 + $0x90] sm:$0xf]
  %v564 = vld [vmem:[%s2 + $0x94] sm:$0xf]
  %v565 = vld [vmem:[%s2 + $0x98] sm:$0xf]
  %v566 = vld [vmem:[%s2 + $0x9c] sm:$0xf]
  %v567 = vld [vmem:[%s2 + $0xa0] sm:$0xf]
  %v568 = vld [vmem:[%s2 + $0xa4] sm:$0xf]
  %v569 = vld [vmem:[%s2 + $0xa8] sm:$0xf]
  %v570 = vld [vmem:[%s2 + $0xac] sm:$0xf]
  %v571 = vld [vmem:[%s2 + $0xb0] sm:$0xf]
  %v572 = vld [vmem:[%s2 + $0xb4] sm:$0xf]
  %v573 = vld [vmem:[%s2 + $0xb8] sm:$0xf]
  %v574 = vld [vmem:[%s2 + $0xbc] sm:$0xf]
  %v575 = vld [vmem:[%s2 + $0xc0] sm:$0xf]
  %v576 = vld [vmem:[%s2 + $0xc4] sm:$0xf]
  %v577 = vld [vmem:[%s2 + $0xc8] sm:$0xf]
  %v578 = vld [vmem:[%s2 + $0xcc] sm:$0xf]
  %v579 = vld [vmem:[%s2 + $0xd0] sm:$0xf]
  %v580 = vld [vmem:[%s2 + $0xd4] sm:$0xf]
  %v581 = vld [vmem:[%s2 + $0xd8] sm:$0xf]
  %v582 = vld [vmem:[%s2 + $0xdc] sm:$0xf]
  %v583 = vld [vmem:[%s2 + $0xe0] sm:$0xf]
  %v584 = vld [vmem:[%s2 + $0xe4] sm:$0xf]
  %v585 = vld [vmem:[%s2 + $0xe8] sm:$0xf]
  %v586 = vld [vmem:[%s2 + $0xec] sm:$0xf]
  %v587 = vld [vmem:[%s2 + $0xf0] sm:$0xf]
  %v588 = vld [vmem:[%s2 + $0xf4] sm:$0xf]
  %v589 = vld [vmem:[%s2 + $0xf8] sm:$0xf]
  %v590 = vld [vmem:[%s2 + $0xfc] sm:$0xf]
  %v591 = vld [vmem:[%s2 + $0x100] sm:$0xf]
  %v592 = vld [vmem:[%s2 + $0x104] sm:$0xf]
  %v593 = vld [vmem:[%s2 + $0x108] sm:$0xf]
  %v594 = vld [vmem:[%s2 + $0x10c] sm:$0xf]
  %v595 = vld [vmem:[%s2 + $0x110] sm:$0xf]
  %v596 = vld [vmem:[%s2 + $0x114] sm:$0xf]
  %v597 = vld [vmem:[%s2 + $0x118] sm:$0xf]
  %v598 = vld [vmem:[%s2 + $0x11c] sm:$0xf]
  %v599 = vld [vmem:[%s2 + $0x120] sm:$0xf]
  %v600 = vld [vmem:[%s2 + $0x124] sm:$0xf]
  %v601 = vld [vmem:[%s2 + $0x128] sm:$0xf]
  %v602 = vld [vmem:[%s2 + $0x12c] sm:$0xf]
  %v603 = vld [vmem:[%s2 + $0x130] sm:$0xf]
  %v604 = vld [vmem:[%s2 + $0x134] sm:$0xf]
  %v605 = vld [vmem:[%s2 + $0x138] sm:$0xf]
  %v606 = vld [vmem:[%s2 + $0x13c] sm:$0xf]
  %v607 = vld [vmem:[%s2 + $0x140] sm:$0xf]
  %v608 = vld [vmem:[%s2 + $0x144] sm:$0xf]
  %v609 = vld [vmem:[%s2 + $0x148] sm:$0xf]
  %v610 = vld [vmem:[%s2 + $0x14c] sm:$0xf]
  %v611 = vld [vmem:[%s2 + $0x150] sm:$0xf]
  %v612 = vld [vmem:[%s2 + $0x154] sm:$0xf]
  %v613 = vld [vmem:[%s2 + $0x158] sm:$0xf]
  %v614 = vld [vmem:[%s2 + $0x15c] sm:$0xf]
  %v615 = vld [vmem:[%s2 + $0x160] sm:$0xf]
  %v616 = vld [vmem:[%s2 + $0x164] sm:$0xf]
  %v617 = vld [vmem:[%s2 + $0x168] sm:$0xf]
  %v618 = vld [vmem:[%s2 + $0x16c] sm:$0xf]
  %v619 = vld [vmem:[%s2 + $0x170] sm:$0xf]
  %v620 = vld [vmem:[%s2 + $0x174] sm:$0xf]
  %v621 = vld [vmem:[%s2 + $0x178] sm:$0xf]
  %v622 = vld [vmem:[%s2 + $0x17c] sm:$0xf]
  %v623 = vld [vmem:[%s2 + $0x180] sm:$0xf]
  %v624 = vld [vmem:[%s2 + $0x184] sm:$0xf]
  %v625 = vld [vmem:[%s2 + $0x188] sm:$0xf]
  %v626 = vld [vmem:[%s2 + $0x18c] sm:$0xf]
  %v627 = vld [vmem:[%s2 + $0x190] sm:$0xf]
  %v628 = vld [vmem:[%s2 + $0x194] sm:$0xf]
  %v629 = vld [vmem:[%s2 + $0x198] sm:$0xf]
  %v630 = vld [vmem:[%s2 + $0x19c] sm:$0xf]
  %v631 = vld [vmem:[%s2 + $0x1a0] sm:$0xf]
  %v632 = vld [vmem:[%s2 + $0x1a4] sm:$0xf]
  %v633 = vld [vmem:[%s2 + $0x1a8] sm:$0xf]
  %v634 = vld [vmem:[%s2 + $0x1ac] sm:$0xf]
  %v635 = vld [vmem:[%s2 + $0x1b0] sm:$0xf]
  %v636 = vld [vmem:[%s2 + $0x1b4] sm:$0xf]
  %v637 = vld [vmem:[%s2 + $0x1b8] sm:$0xf]
  %v638 = vld [vmem:[%s2 + $0x1bc] sm:$0xf]
  %v639 = vld [vmem:[%s2 + $0x1c0] sm:$0xf]
  %v640 = vld [vmem:[%s2 + $0x1c4] sm:$0xf]
  %v641 = vld [vmem:[%s2 + $0x1c8] sm:$0xf]
  %v642 = vld [vmem:[%s2 + $0x1cc] sm:$0xf]
  %v643 = vld [vmem:[%s2 + $0x1d0] sm:$0xf]
  %v644 = vld [vmem:[%s2 + $0x1d4] sm:$0xf]
  %v645 = vld [vmem:[%s2 + $0x1d8] sm:$0xf]
  %v646 = vld [vmem:[%s2 + $0x1dc] sm:$0xf]
  %v647 = vld [vmem:[%s2 + $0x1e0] sm:$0xf]
  %v648 = vld [vmem:[%s2 + $0x1e4] sm:$0xf]
  %v649 = vld [vmem:[%s2 + $0x1e8] sm:$0xf]
  %v650 = vld [vmem:[%s2 + $0x1ec] sm:$0xf]
  %v651 = vld [vmem:[%s2 + $0x1f0] sm:$0xf]
  %v652 = vld [vmem:[%s2 + $0x1f4] sm:$0xf]
  %v653 = vld [vmem:[%s2 + $0x1f8] sm:$0xf]
  %v654 = vld [vmem:[%s2 + $0x1fc] sm:$0xf]
  %v655 = vld [vmem:[%s2 + $0x200] sm:$0xf]
  %v656 = vld [vmem:[%s2 + $0x204] sm:$0xf]
  %v657 = vld [vmem:[%s2 + $0x208] sm:$0xf]
  %v658 = vld [vmem:[%s2 + $0x20c] sm:$0xf]
  %v659 = vld [vmem:[%s2 + $0x210] sm:$0xf]
  %v660 = vld [vmem:[%s2 + $0x214] sm:$0xf]
  %v661 = vld [vmem:[%s2 + $0x218] sm:$0xf]
  %v662 = vld [vmem:[%s2 + $0x21c] sm:$0xf]
  %v663 = vld [vmem:[%s2 + $0x220] sm:$0xf]
  %v664 = vld [vmem:[%s2 + $0x224] sm:$0xf]
  %v665 = vld [vmem:[%s2 + $0x228] sm:$0xf]
  %v666 = vld [vmem:[%s2 + $0x22c] sm:$0xf]
  %v667 = vld [vmem:[%s2 + $0x230] sm:$0xf]
  %v668 = vld [vmem:[%s2 + $0x234] sm:$0xf]
  %v669 = vld [vmem:[%s2 + $0x238] sm:$0xf]
  %v670 = vld [vmem:[%s2 + $0x23c] sm:$0xf]
  %v671 = vld [vmem:[%s2 + $0x240] sm:$0xf]
  %v672 = vld [vmem:[%s2 + $0x244] sm:$0xf]
  %v673 = vld [vmem:[%s2 + $0x248] sm:$0xf]
  %v674 = vld [vmem:[%s2 + $0x24c] sm:$0xf]
  %v675 = vld [vmem:[%s2 + $0x250] sm:$0xf]
  %v676 = vld [vmem:[%s2 + $0x254] sm:$0xf]
  %v677 = vld [vmem:[%s2 + $0x258] sm:$0xf]
  %v678 = vld [vmem:[%s2 + $0x25c] sm:$0xf]
  %v679 = vld [vmem:[%s2 + $0x260] sm:$0xf]
  %v680 = vld [vmem:[%s2 + $0x264] sm:$0xf]
  %v681 = vld [vmem:[%s2 + $0x268] sm:$0xf]
  %v682 = vld [vmem:[%s2 + $0x26c] sm:$0xf]
  %v683 = vld [vmem:[%s2 + $0x270] sm:$0xf]
  %v684 = vld [vmem:[%s2 + $0x274] sm:$0xf]
  %v685 = vld [vmem:[%s2 + $0x278] sm:$0xf]
  %v686 = vld [vmem:[%s2 + $0x27c] sm:$0xf]
  %v687 = vld [vmem:[%s2 + $0x280] sm:$0xf]
  %v688 = vld [vmem:[%s2 + $0x284] sm:$0xf]
  %v689 = vld [vmem:[%s2 + $0x288] sm:$0xf]
  %v690 = vld [vmem:[%s2 + $0x28c] sm:$0xf]
  %v691 = vld [vmem:[%s2 + $0x290] sm:$0xf]
  %v692 = vld [vmem:[%s2 + $0x294] sm:$0xf]
  %v693 = vld [vmem:[%s2 + $0x298] sm:$0xf]
  %v694 = vld [vmem:[%s2 + $0x29c] sm:$0xf]
  %v695 = vld [vmem:[%s2 + $0x2a0] sm:$0xf]
  %v696 = vld [vmem:[%s2 + $0x2a4] sm:$0xf]
  %v697 = vld [vmem:[%s2 + $0x2a8] sm:$0xf]
  %v698 = vld [vmem:[%s2 + $0x2ac] sm:$0xf]
  %v699 = vld [vmem:[%s2 + $0x2b0] sm:$0xf]
  %v700 = vld [vmem:[%s2 + $0x2b4] sm:$0xf]
  %v701 = vld [vmem:[%s2 + $0x2b8] sm:$0xf]
  %v702 = vld [vmem:[%s2 + $0x2bc] sm:$0xf]
  %v703 = vld [vmem:[%s2 + $0x2c0] sm:$0xf]
  %v704 = vld [vmem:[%s2 + $0x2c4] sm:$0xf]
  %v705 = vld [vmem:[%s2 + $0x2c8] sm:$0xf]
  %v706 = vld [vmem:[%s2 + $0x2cc] sm:$0xf]
  %v707 = vld [vmem:[%s2 + $0x2d0] sm:$0xf]
  %v708 = vld [vmem:[%s2 + $0x2d4] sm:$0xf]
  %v709 = vld [vmem:[%s2 + $0x2d8] sm:$0xf]
  %v710 = vld [vmem:[%s2 + $0x2dc] sm:$0xf]
  %v711 = vld [vmem:[%s2 + $0x2e0] sm:$0xf]
  %v712 = vld [vmem:[%s2 + $0x2e4] sm:$0xf]
  %v713 = vld [vmem:[%s2 + $0x2e8] sm:$0xf]
  %v714 = vld [vmem:[%s2 + $0x2ec] sm:$0xf]
  %v715 = vld [vmem:[%s2 + $0x2f0] sm:$0xf]
  %v716 = vld [vmem:[%s2 + $0x2f4] sm:$0xf]
  %v717 = vld [vmem:[%s2 + $0x2f8] sm:$0xf]
  %v718 = vld [vmem:[%s2 + $0x2fc] sm:$0xf]
  %v719 = vld [vmem:[%s3] sm:$0x1]
  %v721 = vlaneseq
  %v722 = vshrl.u32 %v721, 7
  %v723 = vsub.s32 0, %v722
  %v724 = vrot.slane %v719, %v723
  %v918 = vunpack.c.l.b16 %v527
  %v919 = vunpack.c.l.b16 %v528
  %v920 = vunpack.c.l.b16 %v529
  %v921 = vunpack.c.l.b16 %v530
  %v922 = vunpack.c.l.b16 %v531
  %v923 = vunpack.c.l.b16 %v532
  %v924 = vunpack.c.l.b16 %v533
  %v925 = vunpack.c.l.b16 %v534
  %v926 = vunpack.c.l.b16 %v535
  %v927 = vunpack.c.l.b16 %v536
  %v928 = vunpack.c.l.b16 %v537
  %v929 = vunpack.c.l.b16 %v538
  %v930 = vunpack.c.l.b16 %v539
  %v931 = vunpack.c.l.b16 %v540
  %v932 = vunpack.c.l.b16 %v541
  %v933 = vunpack.c.l.b16 %v542
  %v934 = vunpack.c.l.b16 %v543
  %v935 = vunpack.c.l.b16 %v544
  %v936 = vunpack.c.l.b16 %v545
  %v937 = vunpack.c.l.b16 %v546
  %v938 = vunpack.c.l.b16 %v547
  %v939 = vunpack.c.l.b16 %v548
  %v940 = vunpack.c.l.b16 %v549
  %v941 = vunpack.c.l.b16 %v550
  %v942 = vunpack.c.l.b16 %v551
  %v943 = vunpack.c.l.b16 %v552
  %v944 = vunpack.c.l.b16 %v553
  %v945 = vunpack.c.l.b16 %v554
  %v946 = vunpack.c.l.b16 %v555
  %v947 = vunpack.c.l.b16 %v556
  %v948 = vunpack.c.l.b16 %v557
  %v949 = vunpack.c.l.b16 %v558
  %v950 = vunpack.c.l.b16 %v559
  %v951 = vunpack.c.l.b16 %v560
  %v952 = vunpack.c.l.b16 %v561
  %v953 = vunpack.c.l.b16 %v562
  %v954 = vunpack.c.l.b16 %v563
  %v955 = vunpack.c.l.b16 %v564
  %v956 = vunpack.c.l.b16 %v565
  %v957 = vunpack.c.l.b16 %v566
  %v958 = vunpack.c.l.b16 %v567
  %v959 = vunpack.c.l.b16 %v568
  %v960 = vunpack.c.l.b16 %v569
  %v961 = vunpack.c.l.b16 %v570
  %v962 = vunpack.c.l.b16 %v571
  %v963 = vunpack.c.l.b16 %v572
  %v964 = vunpack.c.l.b16 %v573
  %v965 = vunpack.c.l.b16 %v574
  %v966 = vunpack.c.l.b16 %v575
  %v967 = vunpack.c.l.b16 %v576
  %v968 = vunpack.c.l.b16 %v577
  %v969 = vunpack.c.l.b16 %v578
  %v970 = vunpack.c.l.b16 %v579
  %v971 = vunpack.c.l.b16 %v580
  %v972 = vunpack.c.l.b16 %v581
  %v973 = vunpack.c.l.b16 %v582
  %v974 = vunpack.c.l.b16 %v583
  %v975 = vunpack.c.l.b16 %v584
  %v976 = vunpack.c.l.b16 %v585
  %v977 = vunpack.c.l.b16 %v586
  %v978 = vunpack.c.l.b16 %v587
  %v979 = vunpack.c.l.b16 %v588
  %v980 = vunpack.c.l.b16 %v589
  %v981 = vunpack.c.l.b16 %v590
  %v982 = vunpack.c.l.b16 %v591
  %v983 = vunpack.c.l.b16 %v592
  %v984 = vunpack.c.l.b16 %v593
  %v985 = vunpack.c.l.b16 %v594
  %v986 = vunpack.c.l.b16 %v595
  %v987 = vunpack.c.l.b16 %v596
  %v988 = vunpack.c.l.b16 %v597
  %v989 = vunpack.c.l.b16 %v598
  %v990 = vunpack.c.l.b16 %v599
  %v991 = vunpack.c.l.b16 %v600
  %v992 = vunpack.c.l.b16 %v601
  %v993 = vunpack.c.l.b16 %v602
  %v994 = vunpack.c.l.b16 %v603
  %v995 = vunpack.c.l.b16 %v604
  %v996 = vunpack.c.l.b16 %v605
  %v997 = vunpack.c.l.b16 %v606
  %v998 = vunpack.c.l.b16 %v607
  %v999 = vunpack.c.l.b16 %v608
  %v1000 = vunpack.c.l.b16 %v609
  %v1001 = vunpack.c.l.b16 %v610
  %v1002 = vunpack.c.l.b16 %v611
  %v1003 = vunpack.c.l.b16 %v612
  %v1004 = vunpack.c.l.b16 %v613
  %v1005 = vunpack.c.l.b16 %v614
  %v1006 = vunpack.c.l.b16 %v615
  %v1007 = vunpack.c.l.b16 %v616
  %v1008 = vunpack.c.l.b16 %v617
  %v1009 = vunpack.c.l.b16 %v618
  %v1010 = vunpack.c.l.b16 %v619
  %v1011 = vunpack.c.l.b16 %v620
  %v1012 = vunpack.c.l.b16 %v621
  %v1013 = vunpack.c.l.b16 %v622
  %v1014 = vunpack.c.l.b16 %v623
  %v1015 = vunpack.c.l.b16 %v624
  %v1016 = vunpack.c.l.b16 %v625
  %v1017 = vunpack.c.l.b16 %v626
  %v1018 = vunpack.c.l.b16 %v627
  %v1019 = vunpack.c.l.b16 %v628
  %v1020 = vunpack.c.l.b16 %v629
  %v1021 = vunpack.c.l.b16 %v630
  %v1022 = vunpack.c.l.b16 %v631
  %v1023 = vunpack.c.l.b16 %v632
  %v1024 = vunpack.c.l.b16 %v633
  %v1025 = vunpack.c.l.b16 %v634
  %v1026 = vunpack.c.l.b16 %v635
  %v1027 = vunpack.c.l.b16 %v636
  %v1028 = vunpack.c.l.b16 %v637
  %v1029 = vunpack.c.l.b16 %v638
  %v1030 = vunpack.c.l.b16 %v639
  %v1031 = vunpack.c.l.b16 %v640
  %v1032 = vunpack.c.l.b16 %v641
  %v1033 = vunpack.c.l.b16 %v642
  %v1034 = vunpack.c.l.b16 %v643
  %v1035 = vunpack.c.l.b16 %v644
  %v1036 = vunpack.c.l.b16 %v645
  %v1037 = vunpack.c.l.b16 %v646
  %v1038 = vunpack.c.l.b16 %v647
  %v1039 = vunpack.c.l.b16 %v648
  %v1040 = vunpack.c.l.b16 %v649
  %v1041 = vunpack.c.l.b16 %v650
  %v1042 = vunpack.c.l.b16 %v651
  %v1043 = vunpack.c.l.b16 %v652
  %v1044 = vunpack.c.l.b16 %v653
  %v1045 = vunpack.c.l.b16 %v654
  %v1046 = vunpack.c.l.b16 %v655
  %v1047 = vunpack.c.l.b16 %v656
  %v1048 = vunpack.c.l.b16 %v657
  %v1049 = vunpack.c.l.b16 %v658
  %v1050 = vunpack.c.l.b16 %v659
  %v1051 = vunpack.c.l.b16 %v660
  %v1052 = vunpack.c.l.b16 %v661
  %v1053 = vunpack.c.l.b16 %v662
  %v1054 = vunpack.c.l.b16 %v663
  %v1055 = vunpack.c.l.b16 %v664
  %v1056 = vunpack.c.l.b16 %v665
  %v1057 = vunpack.c.l.b16 %v666
  %v1058 = vunpack.c.l.b16 %v667
  %v1059 = vunpack.c.l.b16 %v668
  %v1060 = vunpack.c.l.b16 %v669
  %v1061 = vunpack.c.l.b16 %v670
  %v1062 = vunpack.c.l.b16 %v671
  %v1063 = vunpack.c.l.b16 %v672
  %v1064 = vunpack.c.l.b16 %v673
  %v1065 = vunpack.c.l.b16 %v674
  %v1066 = vunpack.c.l.b16 %v675
  %v1067 = vunpack.c.l.b16 %v676
  %v1068 = vunpack.c.l.b16 %v677
  %v1069 = vunpack.c.l.b16 %v678
  %v1070 = vunpack.c.l.b16 %v679
  %v1071 = vunpack.c.l.b16 %v680
  %v1072 = vunpack.c.l.b16 %v681
  %v1073 = vunpack.c.l.b16 %v682
  %v1074 = vunpack.c.l.b16 %v683
  %v1075 = vunpack.c.l.b16 %v684
  %v1076 = vunpack.c.l.b16 %v685
  %v1077 = vunpack.c.l.b16 %v686
  %v1078 = vunpack.c.l.b16 %v687
  %v1079 = vunpack.c.l.b16 %v688
  %v1080 = vunpack.c.l.b16 %v689
  %v1081 = vunpack.c.l.b16 %v690
  %v1082 = vunpack.c.l.b16 %v691
  %v1083 = vunpack.c.l.b16 %v692
  %v1084 = vunpack.c.l.b16 %v693
  %v1085 = vunpack.c.l.b16 %v694
  %v1086 = vunpack.c.l.b16 %v695
  %v1087 = vunpack.c.l.b16 %v696
  %v1088 = vunpack.c.l.b16 %v697
  %v1089 = vunpack.c.l.b16 %v698
  %v1090 = vunpack.c.l.b16 %v699
  %v1091 = vunpack.c.l.b16 %v700
  %v1092 = vunpack.c.l.b16 %v701
  %v1093 = vunpack.c.l.b16 %v702
  %v1094 = vunpack.c.l.b16 %v703
  %v1095 = vunpack.c.l.b16 %v704
  %v1096 = vunpack.c.l.b16 %v705
  %v1097 = vunpack.c.l.b16 %v706
  %v1098 = vunpack.c.l.b16 %v707
  %v1099 = vunpack.c.l.b16 %v708
  %v1100 = vunpack.c.l.b16 %v709
  %v1101 = vunpack.c.l.b16 %v710
  %v1102 = vunpack.c.l.b16 %v711
  %v1103 = vunpack.c.l.b16 %v712
  %v1104 = vunpack.c.l.b16 %v713
  %v1105 = vunpack.c.l.b16 %v714
  %v1106 = vunpack.c.l.b16 %v715
  %v1107 = vunpack.c.l.b16 %v716
  %v1108 = vunpack.c.l.b16 %v717
  %v1109 = vunpack.c.l.b16 %v718
  %v1110 = vpack.c.b16 %v919, %v918
  %v1111 = vpack.c.b16 %v921, %v920
  %v1112 = vpack.c.b16 %v923, %v922
  %v1113 = vpack.c.b16 %v925, %v924
  %v1114 = vpack.c.b16 %v927, %v926
  %v1115 = vpack.c.b16 %v929, %v928
  %v1116 = vpack.c.b16 %v931, %v930
  %v1117 = vpack.c.b16 %v933, %v932
  %v1118 = vpack.c.b16 %v935, %v934
  %v1119 = vpack.c.b16 %v937, %v936
  %v1120 = vpack.c.b16 %v939, %v938
  %v1121 = vpack.c.b16 %v941, %v940
  %v1122 = vpack.c.b16 %v943, %v942
  %v1123 = vpack.c.b16 %v945, %v944
  %v1124 = vpack.c.b16 %v947, %v946
  %v1125 = vpack.c.b16 %v949, %v948
  %v1126 = vpack.c.b16 %v951, %v950
  %v1127 = vpack.c.b16 %v953, %v952
  %v1128 = vpack.c.b16 %v955, %v954
  %v1129 = vpack.c.b16 %v957, %v956
  %v1130 = vpack.c.b16 %v959, %v958
  %v1131 = vpack.c.b16 %v961, %v960
  %v1132 = vpack.c.b16 %v963, %v962
  %v1133 = vpack.c.b16 %v965, %v964
  %v1134 = vpack.c.b16 %v967, %v966
  %v1135 = vpack.c.b16 %v969, %v968
  %v1136 = vpack.c.b16 %v971, %v970
  %v1137 = vpack.c.b16 %v973, %v972
  %v1138 = vpack.c.b16 %v975, %v974
  %v1139 = vpack.c.b16 %v977, %v976
  %v1140 = vpack.c.b16 %v979, %v978
  %v1141 = vpack.c.b16 %v981, %v980
  %v1142 = vpack.c.b16 %v983, %v982
  %v1143 = vpack.c.b16 %v985, %v984
  %v1144 = vpack.c.b16 %v987, %v986
  %v1145 = vpack.c.b16 %v989, %v988
  %v1146 = vpack.c.b16 %v991, %v990
  %v1147 = vpack.c.b16 %v993, %v992
  %v1148 = vpack.c.b16 %v995, %v994
  %v1149 = vpack.c.b16 %v997, %v996
  %v1150 = vpack.c.b16 %v999, %v998
  %v1151 = vpack.c.b16 %v1001, %v1000
  %v1152 = vpack.c.b16 %v1003, %v1002
  %v1153 = vpack.c.b16 %v1005, %v1004
  %v1154 = vpack.c.b16 %v1007, %v1006
  %v1155 = vpack.c.b16 %v1009, %v1008
  %v1156 = vpack.c.b16 %v1011, %v1010
  %v1157 = vpack.c.b16 %v1013, %v1012
  %v1158 = vpack.c.b16 %v1015, %v1014
  %v1159 = vpack.c.b16 %v1017, %v1016
  %v1160 = vpack.c.b16 %v1019, %v1018
  %v1161 = vpack.c.b16 %v1021, %v1020
  %v1162 = vpack.c.b16 %v1023, %v1022
  %v1163 = vpack.c.b16 %v1025, %v1024
  %v1164 = vpack.c.b16 %v1027, %v1026
  %v1165 = vpack.c.b16 %v1029, %v1028
  %v1166 = vpack.c.b16 %v1031, %v1030
  %v1167 = vpack.c.b16 %v1033, %v1032
  %v1168 = vpack.c.b16 %v1035, %v1034
  %v1169 = vpack.c.b16 %v1037, %v1036
  %v1170 = vpack.c.b16 %v1039, %v1038
  %v1171 = vpack.c.b16 %v1041, %v1040
  %v1172 = vpack.c.b16 %v1043, %v1042
  %v1173 = vpack.c.b16 %v1045, %v1044
  %v1174 = vpack.c.b16 %v1047, %v1046
  %v1175 = vpack.c.b16 %v1049, %v1048
  %v1176 = vpack.c.b16 %v1051, %v1050
  %v1177 = vpack.c.b16 %v1053, %v1052
  %v1178 = vpack.c.b16 %v1055, %v1054
  %v1179 = vpack.c.b16 %v1057, %v1056
  %v1180 = vpack.c.b16 %v1059, %v1058
  %v1181 = vpack.c.b16 %v1061, %v1060
  %v1182 = vpack.c.b16 %v1063, %v1062
  %v1183 = vpack.c.b16 %v1065, %v1064
  %v1184 = vpack.c.b16 %v1067, %v1066
  %v1185 = vpack.c.b16 %v1069, %v1068
  %v1186 = vpack.c.b16 %v1071, %v1070
  %v1187 = vpack.c.b16 %v1073, %v1072
  %v1188 = vpack.c.b16 %v1075, %v1074
  %v1189 = vpack.c.b16 %v1077, %v1076
  %v1190 = vpack.c.b16 %v1079, %v1078
  %v1191 = vpack.c.b16 %v1081, %v1080
  %v1192 = vpack.c.b16 %v1083, %v1082
  %v1193 = vpack.c.b16 %v1085, %v1084
  %v1194 = vpack.c.b16 %v1087, %v1086
  %v1195 = vpack.c.b16 %v1089, %v1088
  %v1196 = vpack.c.b16 %v1091, %v1090
  %v1197 = vpack.c.b16 %v1093, %v1092
  %v1198 = vpack.c.b16 %v1095, %v1094
  %v1199 = vpack.c.b16 %v1097, %v1096
  %v1200 = vpack.c.b16 %v1099, %v1098
  %v1201 = vpack.c.b16 %v1101, %v1100
  %v1202 = vpack.c.b16 %v1103, %v1102
  %v1203 = vpack.c.b16 %v1105, %v1104
  %v1204 = vpack.c.b16 %v1107, %v1106
  %v1205 = vpack.c.b16 %v1109, %v1108
  %1302 = vmatprep.subr.bf16.mxu0 0
  %1303 = vmatpush1.bf16.msra.mxu0 %v1110
  %1304 = vmatprep.subr.bf16.mxu0 0
  %1305 = vmatpush1.bf16.msra.mxu0 %v1111
  %1306 = vmatprep.subr.bf16.mxu0 0
  %1307 = vmatpush1.bf16.msra.mxu0 %v1112
  %1308 = vmatprep.subr.bf16.mxu0 0
  %1309 = vmatpush1.bf16.msra.mxu0 %v1113
  %1310 = vmatprep.subr.bf16.mxu0 0
  %1311 = vmatpush1.bf16.msra.mxu0 %v1114
  %1312 = vmatprep.subr.bf16.mxu0 0
  %1313 = vmatpush1.bf16.msra.mxu0 %v1115
  %1314 = vmatprep.subr.bf16.mxu0 0
  %1315 = vmatpush1.bf16.msra.mxu0 %v1116
  %1316 = vmatprep.subr.bf16.mxu0 0
  %1317 = vmatpush1.bf16.msra.mxu0 %v1117
  %1318 = vmatprep.subr.bf16.mxu0 0
  %1319 = vmatpush1.bf16.msra.mxu0 %v1118
  %1320 = vmatprep.subr.bf16.mxu0 0
  %1321 = vmatpush1.bf16.msra.mxu0 %v1119
  %1322 = vmatprep.subr.bf16.mxu0 0
  %1323 = vmatpush1.bf16.msra.mxu0 %v1120
  %1324 = vmatprep.subr.bf16.mxu0 0
  %1325 = vmatpush1.bf16.msra.mxu0 %v1121
  %1326 = vmatprep.subr.bf16.mxu0 0
  %1327 = vmatpush1.bf16.msra.mxu0 %v1122
  %1328 = vmatprep.subr.bf16.mxu0 0
  %1329 = vmatpush1.bf16.msra.mxu0 %v1123
  %1330 = vmatprep.subr.bf16.mxu0 0
  %1331 = vmatpush1.bf16.msra.mxu0 %v1124
  %1332 = vmatprep.subr.bf16.mxu0 0
  %1333 = vmatpush1.bf16.msra.mxu0 %v1125
  %1334 = vmatprep.mubr.bf16.mxu0 %v516
  %1335 = vmatmul.mubr.bf16.gmra.mrb[0].mxu0 %v515
  %v1336 = vpop.f32.mrb[0].mxu0
  %v1337 = vadd.f32 %v724, %v1336
  %v1338 = vpop.f32.mrb[0].mxu0
  %v1339 = vpop.f32.mrb[0].mxu0
  %v1340 = vpop.f32.mrb[0].mxu0
  %1341 = vdwg.mxu0
  %1342 = vmatprep.subr.bf16.mxu0 0
  %1343 = vmatpush1.bf16.msra.mxu0 %v1126
  %1344 = vmatprep.subr.bf16.mxu0 0
  %1345 = vmatpush1.bf16.msra.mxu0 %v1127
  %1346 = vmatprep.subr.bf16.mxu0 0
  %1347 = vmatpush1.bf16.msra.mxu0 %v1128
  %1348 = vmatprep.subr.bf16.mxu0 0
  %1349 = vmatpush1.bf16.msra.mxu0 %v1129
  %1350 = vmatprep.subr.bf16.mxu0 0
  %1351 = vmatpush1.bf16.msra.mxu0 %v1130
  %1352 = vmatprep.subr.bf16.mxu0 0
  %1353 = vmatpush1.bf16.msra.mxu0 %v1131
  %1354 = vmatprep.subr.bf16.mxu0 0
  %1355 = vmatpush1.bf16.msra.mxu0 %v1132
  %1356 = vmatprep.subr.bf16.mxu0 0
  %1357 = vmatpush1.bf16.msra.mxu0 %v1133
  %1358 = vmatprep.subr.bf16.mxu0 0
  %1359 = vmatpush1.bf16.msra.mxu0 %v1134
  %1360 = vmatprep.subr.bf16.mxu0 0
  %1361 = vmatpush1.bf16.msra.mxu0 %v1135
  %1362 = vmatprep.subr.bf16.mxu0 0
  %1363 = vmatpush1.bf16.msra.mxu0 %v1136
  %1364 = vmatprep.subr.bf16.mxu0 0
  %1365 = vmatpush1.bf16.msra.mxu0 %v1137
  %1366 = vmatprep.subr.bf16.mxu0 0
  %1367 = vmatpush1.bf16.msra.mxu0 %v1138
  %1368 = vmatprep.subr.bf16.mxu0 0
  %1369 = vmatpush1.bf16.msra.mxu0 %v1139
  %1370 = vmatprep.subr.bf16.mxu0 0
  %1371 = vmatpush1.bf16.msra.mxu0 %v1140
  %1372 = vmatprep.subr.bf16.mxu0 0
  %1373 = vmatpush1.bf16.msra.mxu0 %v1141
  %1374 = vmatprep.mubr.bf16.mxu0 %v518
  %1375 = vmatmul.mubr.bf16.gmra.mrb[0].mxu0 %v517
  %v1376 = vpop.f32.mrb[0].mxu0
  %v1377 = vadd.f32 %v1337, %v1376
  %v1378 = vpop.f32.mrb[0].mxu0
  %v1379 = vpop.f32.mrb[0].mxu0
  %v1380 = vpop.f32.mrb[0].mxu0
  %1381 = vdwg.mxu0
  %1382 = vmatprep.subr.bf16.mxu0 0
  %1383 = vmatpush1.bf16.msra.mxu0 %v1142
  %1384 = vmatprep.subr.bf16.mxu0 0
  %1385 = vmatpush1.bf16.msra.mxu0 %v1143
  %1386 = vmatprep.subr.bf16.mxu0 0
  %1387 = vmatpush1.bf16.msra.mxu0 %v1144
  %1388 = vmatprep.subr.bf16.mxu0 0
  %1389 = vmatpush1.bf16.msra.mxu0 %v1145
  %1390 = vmatprep.subr.bf16.mxu0 0
  %1391 = vmatpush1.bf16.msra.mxu0 %v1146
  %1392 = vmatprep.subr.bf16.mxu0 0
  %1393 = vmatpush1.bf16.msra.mxu0 %v1147
  %1394 = vmatprep.subr.bf16.mxu0 0
  %1395 = vmatpush1.bf16.msra.mxu0 %v1148
  %1396 = vmatprep.subr.bf16.mxu0 0
  %1397 = vmatpush1.bf16.msra.mxu0 %v1149
  %1398 = vmatprep.subr.bf16.mxu0 0
  %1399 = vmatpush1.bf16.msra.mxu0 %v1150
  %1400 = vmatprep.subr.bf16.mxu0 0
  %1401 = vmatpush1.bf16.msra.mxu0 %v1151
  %1402 = vmatprep.subr.bf16.mxu0 0
  %1403 = vmatpush1.bf16.msra.mxu0 %v1152
  %1404 = vmatprep.subr.bf16.mxu0 0
  %1405 = vmatpush1.bf16.msra.mxu0 %v1153
  %1406 = vmatprep.subr.bf16.mxu0 0
  %1407 = vmatpush1.bf16.msra.mxu0 %v1154
  %1408 = vmatprep.subr.bf16.mxu0 0
  %1409 = vmatpush1.bf16.msra.mxu0 %v1155
  %1410 = vmatprep.subr.bf16.mxu0 0
  %1411 = vmatpush1.bf16.msra.mxu0 %v1156
  %1412 = vmatprep.subr.bf16.mxu0 0
  %1413 = vmatpush1.bf16.msra.mxu0 %v1157
  %1414 = vmatprep.mubr.bf16.mxu0 %v520
  %1415 = vmatmul.mubr.bf16.gmra.mrb[0].mxu0 %v519
  %v1416 = vpop.f32.mrb[0].mxu0
  %v1417 = vadd.f32 %v1377, %v1416
  %v1418 = vpop.f32.mrb[0].mxu0
  %v1419 = vpop.f32.mrb[0].mxu0
  %v1420 = vpop.f32.mrb[0].mxu0
  %1421 = vdwg.mxu0
  %1422 = vmatprep.subr.bf16.mxu0 0
  %1423 = vmatpush1.bf16.msra.mxu0 %v1158
  %1424 = vmatprep.subr.bf16.mxu0 0
  %1425 = vmatpush1.bf16.msra.mxu0 %v1159
  %1426 = vmatprep.subr.bf16.mxu0 0
  %1427 = vmatpush1.bf16.msra.mxu0 %v1160
  %1428 = vmatprep.subr.bf16.mxu0 0
  %1429 = vmatpush1.bf16.msra.mxu0 %v1161
  %1430 = vmatprep.subr.bf16.mxu0 0
  %1431 = vmatpush1.bf16.msra.mxu0 %v1162
  %1432 = vmatprep.subr.bf16.mxu0 0
  %1433 = vmatpush1.bf16.msra.mxu0 %v1163
  %1434 = vmatprep.subr.bf16.mxu0 0
  %1435 = vmatpush1.bf16.msra.mxu0 %v1164
  %1436 = vmatprep.subr.bf16.mxu0 0
  %1437 = vmatpush1.bf16.msra.mxu0 %v1165
  %1438 = vmatprep.subr.bf16.mxu0 0
  %1439 = vmatpush1.bf16.msra.mxu0 %v1166
  %1440 = vmatprep.subr.bf16.mxu0 0
  %1441 = vmatpush1.bf16.msra.mxu0 %v1167
  %1442 = vmatprep.subr.bf16.mxu0 0
  %1443 = vmatpush1.bf16.msra.mxu0 %v1168
  %1444 = vmatprep.subr.bf16.mxu0 0
  %1445 = vmatpush1.bf16.msra.mxu0 %v1169
  %1446 = vmatprep.subr.bf16.mxu0 0
  %1447 = vmatpush1.bf16.msra.mxu0 %v1170
  %1448 = vmatprep.subr.bf16.mxu0 0
  %1449 = vmatpush1.bf16.msra.mxu0 %v1171
  %1450 = vmatprep.subr.bf16.mxu0 0
  %1451 = vmatpush1.bf16.msra.mxu0 %v1172
  %1452 = vmatprep.subr.bf16.mxu0 0
  %1453 = vmatpush1.bf16.msra.mxu0 %v1173
  %1454 = vmatprep.mubr.bf16.mxu0 %v522
  %1455 = vmatmul.mubr.bf16.gmra.mrb[0].mxu0 %v521
  %v1456 = vpop.f32.mrb[0].mxu0
  %v1457 = vadd.f32 %v1417, %v1456
  %v1458 = vpop.f32.mrb[0].mxu0
  %v1459 = vpop.f32.mrb[0].mxu0
  %v1460 = vpop.f32.mrb[0].mxu0
  %1461 = vdwg.mxu0
  %1462 = vmatprep.subr.bf16.mxu0 0
  %1463 = vmatpush1.bf16.msra.mxu0 %v1174
  %1464 = vmatprep.subr.bf16.mxu0 0
  %1465 = vmatpush1.bf16.msra.mxu0 %v1175
  %1466 = vmatprep.subr.bf16.mxu0 0
  %1467 = vmatpush1.bf16.msra.mxu0 %v1176
  %1468 = vmatprep.subr.bf16.mxu0 0
  %1469 = vmatpush1.bf16.msra.mxu0 %v1177
  %1470 = vmatprep.subr.bf16.mxu0 0
  %1471 = vmatpush1.bf16.msra.mxu0 %v1178
  %1472 = vmatprep.subr.bf16.mxu0 0
  %1473 = vmatpush1.bf16.msra.mxu0 %v1179
  %1474 = vmatprep.subr.bf16.mxu0 0
  %1475 = vmatpush1.bf16.msra.mxu0 %v1180
  %1476 = vmatprep.subr.bf16.mxu0 0
  %1477 = vmatpush1.bf16.msra.mxu0 %v1181
  %1478 = vmatprep.subr.bf16.mxu0 0
  %1479 = vmatpush1.bf16.msra.mxu0 %v1182
  %1480 = vmatprep.subr.bf16.mxu0 0
  %1481 = vmatpush1.bf16.msra.mxu0 %v1183
  %1482 = vmatprep.subr.bf16.mxu0 0
  %1483 = vmatpush1.bf16.msra.mxu0 %v1184
  %1484 = vmatprep.subr.bf16.mxu0 0
  %1485 = vmatpush1.bf16.msra.mxu0 %v1185
  %1486 = vmatprep.subr.bf16.mxu0 0
  %1487 = vmatpush1.bf16.msra.mxu0 %v1186
  %1488 = vmatprep.subr.bf16.mxu0 0
  %1489 = vmatpush1.bf16.msra.mxu0 %v1187
  %1490 = vmatprep.subr.bf16.mxu0 0
  %1491 = vmatpush1.bf16.msra.mxu0 %v1188
  %1492 = vmatprep.subr.bf16.mxu0 0
  %1493 = vmatpush1.bf16.msra.mxu0 %v1189
  %1494 = vmatprep.mubr.bf16.mxu0 %v524
  %1495 = vmatmul.mubr.bf16.gmra.mrb[0].mxu0 %v523
  %v1496 = vpop.f32.mrb[0].mxu0
  %v1497 = vadd.f32 %v1457, %v1496
  %v1498 = vpop.f32.mrb[0].mxu0
  %v1499 = vpop.f32.mrb[0].mxu0
  %v1500 = vpop.f32.mrb[0].mxu0
  %1501 = vdwg.mxu0
  %1502 = vmatprep.subr.bf16.mxu0 0
  %1503 = vmatpush1.bf16.msra.mxu0 %v1190
  %1504 = vmatprep.subr.bf16.mxu0 0
  %1505 = vmatpush1.bf16.msra.mxu0 %v1191
  %1506 = vmatprep.subr.bf16.mxu0 0
  %1507 = vmatpush1.bf16.msra.mxu0 %v1192
  %1508 = vmatprep.subr.bf16.mxu0 0
  %1509 = vmatpush1.bf16.msra.mxu0 %v1193
  %1510 = vmatprep.subr.bf16.mxu0 0
  %1511 = vmatpush1.bf16.msra.mxu0 %v1194
  %1512 = vmatprep.subr.bf16.mxu0 0
  %1513 = vmatpush1.bf16.msra.mxu0 %v1195
  %1514 = vmatprep.subr.bf16.mxu0 0
  %1515 = vmatpush1.bf16.msra.mxu0 %v1196
  %1516 = vmatprep.subr.bf16.mxu0 0
  %1517 = vmatpush1.bf16.msra.mxu0 %v1197
  %1518 = vmatprep.subr.bf16.mxu0 0
  %1519 = vmatpush1.bf16.msra.mxu0 %v1198
  %1520 = vmatprep.subr.bf16.mxu0 0
  %1521 = vmatpush1.bf16.msra.mxu0 %v1199
  %1522 = vmatprep.subr.bf16.mxu0 0
  %1523 = vmatpush1.bf16.msra.mxu0 %v1200
  %1524 = vmatprep.subr.bf16.mxu0 0
  %1525 = vmatpush1.bf16.msra.mxu0 %v1201
  %1526 = vmatprep.subr.bf16.mxu0 0
  %1527 = vmatpush1.bf16.msra.mxu0 %v1202
  %1528 = vmatprep.subr.bf16.mxu0 0
  %1529 = vmatpush1.bf16.msra.mxu0 %v1203
  %1530 = vmatprep.subr.bf16.mxu0 0
  %1531 = vmatpush1.bf16.msra.mxu0 %v1204
  %1532 = vmatprep.subr.bf16.mxu0 0
  %1533 = vmatpush1.bf16.msra.mxu0 %v1205
  %1534 = vmatprep.mubr.bf16.mxu0 %v526
  %1535 = vmatmul.mubr.bf16.gmra.mrb[0].mxu0 %v525
  %v1536 = vpop.f32.mrb[0].mxu0
  %v1537 = vadd.f32 %v1497, %v1536
  %v1538 = vpop.f32.mrb[0].mxu0
  %v1539 = vpop.f32.mrb[0].mxu0
  %v1540 = vpop.f32.mrb[0].mxu0
  %1541 = vdwg.mxu0
  %v1542 = vmax.f32 %v1537, 0.0
  %v1543 = vpack.c.bf16 %v1542, %v1542
  %v1544 = vld [vmem:[%s4] sm:$0xf]
  %v1545 = vld [vmem:[%s4 + $0x4] sm:$0xf]
  %v1546 = vld [vmem:[%s4 + $0x8] sm:$0xf]
  %v1547 = vld [vmem:[%s4 + $0xc] sm:$0xf]
  %v1548 = vld [vmem:[%s4 + $0x10] sm:$0xf]
  %v1549 = vld [vmem:[%s4 + $0x14] sm:$0xf]
  %v1550 = vld [vmem:[%s4 + $0x18] sm:$0xf]
  %v1551 = vld [vmem:[%s4 + $0x1c] sm:$0xf]
  %v1552 = vld [vmem:[%s5] sm:$0x1]
  %v1554 = vlaneseq
  %v1555 = vshrl.u32 %v1554, 7
  %v1556 = vsub.s32 0, %v1555
  %v1557 = vrot.slane %v1552, %v1556
  %v1567 = vunpack.c.l.b16 %v1544
  %v1568 = vunpack.c.l.b16 %v1545
  %v1569 = vunpack.c.l.b16 %v1546
  %v1570 = vunpack.c.l.b16 %v1547
  %v1571 = vunpack.c.l.b16 %v1548
  %v1572 = vunpack.c.l.b16 %v1549
  %v1573 = vunpack.c.l.b16 %v1550
  %v1574 = vunpack.c.l.b16 %v1551
  %v1575 = vpack.c.b16 %v1568, %v1567
  %v1576 = vpack.c.b16 %v1570, %v1569
  %v1577 = vpack.c.b16 %v1572, %v1571
  %v1578 = vpack.c.b16 %v1574, %v1573
  %vm1583 = vcmask 523264
  %v1585 = vsel %vm1583, %v1543, 0
  %1587 = vmatprep.subr.bf16.mxu0 0
  %1588 = vmatpush1.bf16.msra.mxu0 %v1575
  %1589 = vmatprep.subr.bf16.mxu0 0
  %1590 = vmatpush1.bf16.msra.mxu0 %v1576
  %1591 = vmatprep.subr.bf16.mxu0 0
  %1592 = vmatpush1.bf16.msra.mxu0 %v1577
  %1593 = vmatprep.subr.bf16.mxu0 0
  %1594 = vmatpush1.bf16.msra.mxu0 %v1578
  %1595 = vmatprep.subr.bf16.mxu0 0
  %1596 = vmatpush1.bf16.msra.mxu0 0
  %1597 = vmatprep.subr.bf16.mxu0 0
  %1598 = vmatpush1.bf16.msra.mxu0 0
  %1599 = vmatprep.subr.bf16.mxu0 0
  %1600 = vmatpush1.bf16.msra.mxu0 0
  %1601 = vmatprep.subr.bf16.mxu0 0
  %1602 = vmatpush1.bf16.msra.mxu0 0
  %1603 = vmatprep.subr.bf16.mxu0 0
  %1604 = vmatpush1.bf16.msra.mxu0 0
  %1605 = vmatprep.subr.bf16.mxu0 0
  %1606 = vmatpush1.bf16.msra.mxu0 0
  %1607 = vmatprep.subr.bf16.mxu0 0
  %1608 = vmatpush1.bf16.msra.mxu0 0
  %1609 = vmatprep.subr.bf16.mxu0 0
  %1610 = vmatpush1.bf16.msra.mxu0 0
  %1611 = vmatprep.subr.bf16.mxu0 0
  %1612 = vmatpush1.bf16.msra.mxu0 0
  %1613 = vmatprep.subr.bf16.mxu0 0
  %1614 = vmatpush1.bf16.msra.mxu0 0
  %1615 = vmatprep.subr.bf16.mxu0 0
  %1616 = vmatpush1.bf16.msra.mxu0 0
  %1617 = vmatprep.subr.bf16.mxu0 0
  %1618 = vmatpush1.bf16.msra.mxu0 0
  %1619 = vmatprep.mubr.bf16.mxu0 0
  %1620 = vmatmul.mubr.bf16.gmra.mrb[0].mxu0 %v1585
  %v1621 = vpop.f32.mrb[0].mxu0
  %v1622 = vadd.f32 %v1557, %v1621
  %v1623 = vpop.f32.mrb[0].mxu0
  %v1624 = vpop.f32.mrb[0].mxu0
  %v1625 = vpop.f32.mrb[0].mxu0
  %1626 = vdwg.mxu0
  %1627 = vst [vmem:[%s6] sm:$0xff] %v1622
  // Predicated region
  $region26: #{_forward_impl.1} parent=0 // pred_check
    _
  $region27: #{_forward_impl.1} parent=0 // pred_check_branch
    %1629 = sbr.rel (0) target = $region29
  $region28: #{_forward_impl.1} parent=0 // pred_region
    _
  $region29: #{_forward_impl.1} parent=0 // pred_fallthru
    _
  // Predicated region
  $region30: #{_forward_impl.1} parent=0 // pred_check
    _
  $region31: #{_forward_impl.1} parent=0 // pred_check_branch
    %1631 = sbr.rel (0) target = $region33
  $region32: #{_forward_impl.1} parent=0 // pred_region
    _
  $region33: #{_forward_impl.1} parent=0 // pred_fallthru
    _

</llo_original>
